<compile_context>
chip_gen: v7x
topology: tpu7x:2x2x1
jax: 0.10.0
libtpu: 0.0.40
codegen_flags: <defaults>
</compile_context>

<pallas_src>
import functools

import jax
import jax.numpy as jnp
from jax.experimental import pallas as pl
from jax.experimental.pallas import tpu as pltpu

EPS = 1e-5


# ---------------------------------------------------------------------------
# Small helpers
# ---------------------------------------------------------------------------
def _round_up(x, m):
    return ((x + m - 1) // m) * m


@functools.lru_cache(maxsize=None)
def _vmem_limit():
    """Generation-aware scoped-VMEM limit (~48 MiB on 64 MiB parts, ~100 MiB
    on 128 MiB parts)."""
    try:
        cap = int(pltpu.get_tpu_info().vmem_capacity_bytes)
    except Exception:
        cap = 64 * 1024 * 1024
    return int(min(100 * 1024 * 1024, max(cap - 16 * 1024 * 1024, 32 * 1024 * 1024)))


def _compiler_params(sem):
    return pltpu.CompilerParams(dimension_semantics=sem,
                                vmem_limit_bytes=_vmem_limit())


def _pad_axis(a, axis, new_size):
    pad = new_size - a.shape[axis]
    if pad == 0:
        return a
    widths = [(0, 0)] * a.ndim
    widths[axis] = (0, pad)
    return jnp.pad(a, widths)


def _k_plan(cin, max_tk=512):
    """(tk, padded_cin): full Cin when small, else 256-wide lane-aligned tiles
    with Cin zero-padded up to a multiple of the tile."""
    if cin <= max_tk:
        return cin, cin
    tk = 256
    return tk, _round_up(cin, tk)


def _spatial_tile(p, max_tp=512):
    """(tp, padded_p): sublane-aligned spatial tile <= max_tp."""
    pp = _round_up(p, 8)
    if pp <= max_tp:
        return pp, pp
    for t in range(max_tp, 127, -8):
        if pp % t == 0:
            return t, pp
    pp = _round_up(p, max_tp)
    return max_tp, pp


def _mean_rstd(s, ss, count):
    inv = 1.0 / count
    mean = s * inv
    var = jnp.maximum(ss * inv - mean * mean, 0.0)
    return mean, jax.lax.rsqrt(var + EPS)


def _in_relu(y, count):
    """Affine-free InstanceNorm over axis 0 (one-pass stats) + ReLU. y: (P,C) f32."""
    mean, rstd = _mean_rstd(jnp.sum(y, axis=0, keepdims=True),
                            jnp.sum(y * y, axis=0, keepdims=True), count)
    return jnp.maximum((y - mean) * rstd, 0.0)


# ---------------------------------------------------------------------------
# Fused single-pass 1x1 conv -> InstanceNorm -> ReLU (optionally + residual)
# grid = (N, K tiles); whole (P, Cout) f32 accumulator resident (small shapes).
# ---------------------------------------------------------------------------
def _conv1x1_fused_kernel(x_ref, w_ref, o_ref, acc_ref, *, count):
    k = pl.program_id(1)

    @pl.when(k == 0)
    def _():
        acc_ref[...] = jnp.zeros_like(acc_ref)

    acc_ref[...] += jnp.dot(x_ref[0], w_ref[...],
                            preferred_element_type=jnp.float32)

    @pl.when(k == pl.num_programs(1) - 1)
    def _():
        o_ref[0] = _in_relu(acc_ref[...], count).astype(o_ref.dtype)


def _conv1x1_fused_add_kernel(x_ref, w_ref, res_ref, o_ref, acc_ref, *, count):
    k = pl.program_id(1)

    @pl.when(k == 0)
    def _():
        acc_ref[...] = jnp.zeros_like(acc_ref)

    acc_ref[...] += jnp.dot(x_ref[0], w_ref[...],
                            preferred_element_type=jnp.float32)

    @pl.when(k == pl.num_programs(1) - 1)
    def _():
        z = _in_relu(acc_ref[...], count)
        o_ref[0] = jnp.maximum(z + res_ref[0].astype(jnp.float32),
                               0.0).astype(o_ref.dtype)


# ---------------------------------------------------------------------------
# Tiled 1x1 matmul emitting bf16 y and per-sample channel sum / sumsq.
# grid = (N parallel, P tiles, K tiles).  Shared phase-1 of the spatially
# tiled InstanceNorm path and of the downsample BatchNorm path.
# ---------------------------------------------------------------------------
def _conv1x1_stats_kernel(x_ref, w_ref, y_ref, sum_ref, sq_ref, acc_ref):
    p = pl.program_id(1)
    k = pl.program_id(2)

    @pl.when(k == 0)
    def _():
        acc_ref[...] = jnp.zeros_like(acc_ref)

    @pl.when((p == 0) & (k == 0))
    def _():
        sum_ref[...] = jnp.zeros_like(sum_ref)
        sq_ref[...] = jnp.zeros_like(sq_ref)

    acc_ref[...] += jnp.dot(x_ref[0], w_ref[...],
                            preferred_element_type=jnp.float32)

    @pl.when(k == pl.num_programs(2) - 1)
    def _():
        y = acc_ref[...]
        y_ref[0] = y.astype(y_ref.dtype)
        sum_ref[...] += jnp.sum(y, axis=0)[None, None, :]
        sq_ref[...] += jnp.sum(y * y, axis=0)[None, None, :]


def _conv1x1_stats(xf, w, *, max_tp=512):
    """xf: (N, P, Cin); w: (Cin, Cout).  Returns (y bf16 (N, Pp, Cout),
    per-sample sum (N,1,Cout), per-sample sumsq (N,1,Cout), tp, Pp)."""
    N, P, Cin = xf.shape
    Cout = w.shape[-1]
    tk, cin_p = _k_plan(Cin)
    tp, pp = _spatial_tile(P, max_tp)
    xb = _pad_axis(_pad_axis(xf.astype(jnp.bfloat16), 2, cin_p), 1, pp)
    wb = _pad_axis(w.astype(jnp.bfloat16), 0, cin_p)
    n_p, n_k = pp // tp, cin_p // tk
    y, s, ss = pl.pallas_call(
        _conv1x1_stats_kernel,
        out_shape=(jax.ShapeDtypeStruct((N, pp, Cout), jnp.bfloat16),
                   jax.ShapeDtypeStruct((N, 1, Cout), jnp.float32),
                   jax.ShapeDtypeStruct((N, 1, Cout), jnp.float32)),
        grid=(N, n_p, n_k),
        in_specs=[pl.BlockSpec((1, tp, tk), lambda n, p, k: (n, p, k)),
                  pl.BlockSpec((tk, Cout), lambda n, p, k: (k, 0))],
        out_specs=(pl.BlockSpec((1, tp, Cout), lambda n, p, k: (n, p, 0)),
                   pl.BlockSpec((1, 1, Cout), lambda n, p, k: (n, 0, 0)),
                   pl.BlockSpec((1, 1, Cout), lambda n, p, k: (n, 0, 0))),
        scratch_shapes=[pltpu.VMEM((tp, Cout), jnp.float32)],
        compiler_params=_compiler_params(("parallel", "arbitrary", "arbitrary")),
    )(xb, wb)
    return y, s, ss, tp, pp


# ---------------------------------------------------------------------------
# Phase-2 InstanceNorm normalize (+ optional residual add) kernels, tiled.
# ---------------------------------------------------------------------------
def _in_norm_kernel(y_ref, sum_ref, sq_ref, o_ref, *, count):
    mean, rstd = _mean_rstd(sum_ref[0], sq_ref[0], count)
    y = y_ref[0].astype(jnp.float32)
    o_ref[0] = jnp.maximum((y - mean) * rstd, 0.0).astype(o_ref.dtype)


def _in_norm_add_kernel(y_ref, res_ref, sum_ref, sq_ref, o_ref, *, count):
    mean, rstd = _mean_rstd(sum_ref[0], sq_ref[0], count)
    y = y_ref[0].astype(jnp.float32)
    z = jnp.maximum((y - mean) * rstd, 0.0)
    o_ref[0] = jnp.maximum(z + res_ref[0].astype(jnp.float32),
                           0.0).astype(o_ref.dtype)


def conv1x1_in_relu(x, w, res=None, out_dtype=jnp.bfloat16, force_tiled=False):
    """1x1 conv -> InstanceNorm -> ReLU [-> + res -> ReLU].
    x: (N,H,W,Cin) NHWC; w: (Cin,Cout); res: (N,H,W,Cout) or None."""
    N, H, W, Cin = x.shape
    Cout = w.shape[-1]
    P = H * W
    xf = x.reshape(N, P, Cin)
    resf = None if res is None else res.reshape(N, P, Cout).astype(jnp.bfloat16)

    tk, cin_p = _k_plan(Cin)
    fused_bytes = (P * Cout * 4 + 2 * P * tk * 2 + 2 * tk * Cout * 2
                   + 2 * P * Cout * jnp.dtype(out_dtype).itemsize
                   + (0 if resf is None else 2 * P * Cout * 2))

    if not force_tiled and fused_bytes <= _vmem_limit() // 2:
        # Fully fused single-pass path (small per-sample residency).
        xb = _pad_axis(xf.astype(jnp.bfloat16), 2, cin_p)
        wb = _pad_axis(w.astype(jnp.bfloat16), 0, cin_p)
        n_k = cin_p // tk
        in_specs = [pl.BlockSpec((1, P, tk), lambda n, k: (n, 0, k)),
                    pl.BlockSpec((tk, Cout), lambda n, k: (k, 0))]
        args = [xb, wb]
        kernel = _conv1x1_fused_kernel
        if resf is not None:
            in_specs.append(pl.BlockSpec((1, P, Cout), lambda n, k: (n, 0, 0)))
            args.append(resf)
            kernel = _conv1x1_fused_add_kernel
        out = pl.pallas_call(
            functools.partial(kernel, count=float(P)),
            out_shape=jax.ShapeDtypeStruct((N, P, Cout), out_dtype),
            grid=(N, n_k),
            in_specs=in_specs,
            out_specs=pl.BlockSpec((1, P, Cout), lambda n, k: (n, 0, 0)),
            scratch_shapes=[pltpu.VMEM((P, Cout), jnp.float32)],
            compiler_params=_compiler_params(("parallel", "arbitrary")),
        )(*args)
        return out.reshape(N, H, W, Cout)

    # Spatially tiled two-phase path (keeps VMEM residency bounded at large H*W).
    y, s, ss, tp, pp = _conv1x1_stats(xf, w)
    if resf is not None and pp != P:
        resf = _pad_axis(resf, 1, pp)
    n_p = pp // tp
    in_specs = [pl.BlockSpec((1, tp, Cout), lambda n, p: (n, p, 0))]
    args = [y]
    kernel = _in_norm_kernel
    if resf is not None:
        in_specs.append(pl.BlockSpec((1, tp, Cout), lambda n, p: (n, p, 0)))
        args.append(resf)
        kernel = _in_norm_add_kernel
    in_specs += [pl.BlockSpec((1, 1, Cout), lambda n, p: (n, 0, 0)),
                 pl.BlockSpec((1, 1, Cout), lambda n, p: (n, 0, 0))]
    args += [s, ss]
    out = pl.pallas_call(
        functools.partial(kernel, count=float(P)),
        out_shape=jax.ShapeDtypeStruct((N, pp, Cout), out_dtype),
        grid=(N, n_p),
        in_specs=in_specs,
        out_specs=pl.BlockSpec((1, tp, Cout), lambda n, p: (n, p, 0)),
        compiler_params=_compiler_params(("parallel", "parallel")),
    )(*args)
    if pp != P:
        out = out[:, :P, :]
    return out.reshape(N, H, W, Cout)


# ---------------------------------------------------------------------------
# 3x3 conv (zero pad 1) -> InstanceNorm -> ReLU
# ---------------------------------------------------------------------------
def _conv3x3_s1_kernel(x_ref, mask_ref, w_ref, o_ref, acc_ref, *, H, W, Wp):
    # x_ref: (1, (H+2)*Wp, Cin) flattened zero-padded input with Wp % 8 == 0.
    # Output row q = h*Wp + w; tap (i, j) needs input row q + i*Wp + j.  The
    # three i-offsets are sublane-aligned static slices; the j shift is done
    # with pltpu.roll (XLU) on the f32 tap partial (no misaligned relayouts).
    R = H * Wp
    first = True
    for i in range(3):
        base = x_ref[0, i * Wp:i * Wp + R, :]
        for j in range(3):
            part = jnp.dot(base, w_ref[3 * i + j],
                           preferred_element_type=jnp.float32)
            if j:
                # want part[q + j]; the j wrapped rows land on pad columns
                # (masked from stats and sliced off outside).
                part = pltpu.roll(part, shift=R - j, axis=0)
            if first:
                acc_ref[...] = part
                first = False
            else:
                acc_ref[...] += part
    acc = acc_ref[...]
    m = mask_ref[...]                            # (R, 1): 1 = valid column
    mean, rstd = _mean_rstd(jnp.sum(acc * m, axis=0, keepdims=True),
                            jnp.sum(acc * acc * m, axis=0, keepdims=True),
                            float(H * W))
    z = jnp.maximum((acc - mean) * rstd, 0.0)
    o_ref[0] = z.astype(o_ref.dtype)             # one lane-dense store


def conv3x3_in_relu(x, w, stride=1, out_dtype=jnp.bfloat16):
    """3x3 conv (pad 1) -> InstanceNorm -> ReLU.  x NHWC; w (3,3,Cin,Cout)."""
    N, H, W, Cin = x.shape
    Cout = w.shape[-1]
    if stride == 1:
        Wp = _round_up(W + 2, 8)                 # sublane-aligned padded width
        xp = jnp.pad(x.astype(jnp.bfloat16),
                     ((0, 0), (1, 1), (1, Wp - W - 1), (0, 0)))
        F = (H + 2) * Wp
        R = H * Wp
        xf = xp.reshape(N, F, Cin)
        w9 = w.reshape(9, Cin, Cout).astype(jnp.bfloat16)
        col = jax.lax.broadcasted_iota(jnp.int32, (R, 1), 0) % Wp
        mask = (col < W).astype(jnp.float32)
        # TODO(synk): R (= H*Wp) is not tiled; very large resolutions would
        # need a spatially tiled variant for v7x VMEM headroom.
        out_p = pl.pallas_call(
            functools.partial(_conv3x3_s1_kernel, H=H, W=W, Wp=Wp),
            out_shape=jax.ShapeDtypeStruct((N, R, Cout), out_dtype),
            grid=(N,),
            in_specs=[pl.BlockSpec((1, F, Cin), lambda n: (n, 0, 0)),
                      pl.BlockSpec((R, 1), lambda n: (0, 0)),
                      pl.BlockSpec((9, Cin, Cout), lambda n: (0, 0, 0))],
            out_specs=pl.BlockSpec((1, R, Cout), lambda n: (n, 0, 0)),
            scratch_shapes=[pltpu.VMEM((R, Cout), jnp.float32)],
            compiler_params=_compiler_params(("parallel",)),
        )(xf, mask, w9)
        return out_p.reshape(N, H, Wp, Cout)[:, :, :W, :]

    # stride > 1: gather the 9 strided taps (~9/stride^2 of x) and collapse
    # them into one deep matmul (K = 9*Cin) through the 1x1 machinery.
    # TODO(synk): the tap stack is materialized in HBM; an in-kernel DMA
    # gather would avoid that extra pass.
    s = stride
    Ho = (H + 2 - 3) // s + 1
    Wo = (W + 2 - 3) // s + 1
    xp = jnp.pad(x.astype(jnp.bfloat16), ((0, 0), (1, 1), (1, 1), (0, 0)))
    taps = [xp[:, i:i + (Ho - 1) * s + 1:s, j:j + (Wo - 1) * s + 1:s, :]
            for i in range(3) for j in range(3)]
    xt = jnp.stack(taps, axis=3).reshape(N, Ho, Wo, 9 * Cin)
    wf = w.reshape(9 * Cin, Cout).astype(jnp.bfloat16)
    return conv1x1_in_relu(xt, wf, out_dtype=out_dtype)


# ---------------------------------------------------------------------------
# Downsample branch: strided 1x1 conv -> BatchNorm(affine) -> ReLU, fused with
# the residual add + final ReLU.
# ---------------------------------------------------------------------------
def _bn_add_relu_kernel(out3_ref, yd_ref, sum_ref, sq_ref, g_ref, b_ref,
                        o_ref, *, count):
    mean, rstd = _mean_rstd(sum_ref[0], sq_ref[0], count)
    identity = jnp.maximum(
        (yd_ref[0].astype(jnp.float32) - mean) * rstd * g_ref[0] + b_ref[0], 0.0)
    o_ref[0] = jnp.maximum(out3_ref[0].astype(jnp.float32) + identity,
                           0.0).astype(o_ref.dtype)


def downsample_add_relu(x, out3, wd, gamma, beta, stride):
    xs = x[:, ::stride, ::stride, :] if stride > 1 else x
    N, Ho, Wo, Cin = xs.shape
    C = wd.shape[-1]
    P = Ho * Wo
    # Phase 1: strided 1x1 conv, bf16 y + per-sample BN partials (N parallel).
    yd, s, ss, tp, pp = _conv1x1_stats(xs.reshape(N, P, Cin), wd)
    s_tot = jnp.sum(s, axis=0, keepdims=True)        # (1, 1, C) batch reduce
    ss_tot = jnp.sum(ss, axis=0, keepdims=True)
    out3f = out3.reshape(N, P, C).astype(jnp.bfloat16)
    if pp != P:
        out3f = _pad_axis(out3f, 1, pp)
    n_p = pp // tp
    out = pl.pallas_call(
        functools.partial(_bn_add_relu_kernel, count=float(N * P)),
        out_shape=jax.ShapeDtypeStruct((N, pp, C), jnp.float32),
        grid=(N, n_p),
        in_specs=[pl.BlockSpec((1, tp, C), lambda n, p: (n, p, 0)),
                  pl.BlockSpec((1, tp, C), lambda n, p: (n, p, 0)),
                  pl.BlockSpec((1, 1, C), lambda n, p: (0, 0, 0)),
                  pl.BlockSpec((1, 1, C), lambda n, p: (0, 0, 0)),
                  pl.BlockSpec((1, 1, C), lambda n, p: (0, 0, 0)),
                  pl.BlockSpec((1, 1, C), lambda n, p: (0, 0, 0))],
        out_specs=pl.BlockSpec((1, tp, C), lambda n, p: (n, p, 0)),
        compiler_params=_compiler_params(("parallel", "parallel")),
    )(out3f, yd, s_tot, ss_tot,
      gamma.reshape(1, 1, C).astype(jnp.float32),
      beta.reshape(1, 1, C).astype(jnp.float32))
    if pp != P:
        out = out[:, :P, :]
    return out.reshape(N, Ho, Wo, C)


# ---------------------------------------------------------------------------
# Bottleneck_IN forward
# ---------------------------------------------------------------------------
def make_bottleneck_params(key, inplanes, planes, stride=1, first=False):
    expansion = 4
    ks = jax.random.split(key, 4)
    scale = 0.1
    # Conv biases omitted: a per-channel bias is exactly cancelled by the mean
    # subtraction of affine-free InstanceNorm / training-mode BatchNorm.
    p = {
        "w1": scale * jax.random.normal(ks[0], (inplanes, planes), jnp.float32),
        "w2": scale * jax.random.normal(ks[1], (3, 3, planes, planes), jnp.float32),
        "w3": scale * jax.random.normal(ks[2], (planes, planes * expansion), jnp.float32),
    }
    if stride != 1 or first:
        p["wd"] = scale * jax.random.normal(ks[3], (inplanes, planes * expansion), jnp.float32)
        p["gamma_d"] = jnp.ones((planes * expansion,), jnp.float32)
        p["beta_d"] = jnp.zeros((planes * expansion,), jnp.float32)
    return p


@functools.partial(jax.jit, static_argnames=("stride", "first"))
def bottleneck_in_forward(x, params, stride=1, first=False):
    """x: NHWC float32.  Matches Bottleneck_IN.forward (training-mode BN)."""
    out = conv1x1_in_relu(x, params["w1"], out_dtype=jnp.bfloat16)          # conv1 1x1
    out = conv3x3_in_relu(out, params["w2"], stride=stride,
                          out_dtype=jnp.bfloat16)                            # conv2 3x3
    if stride != 1 or first:
        out3 = conv1x1_in_relu(out, params["w3"], out_dtype=jnp.bfloat16)    # conv3 1x1
        return downsample_add_relu(x, out3, params["wd"],
                                   params["gamma_d"], params["beta_d"], stride)
    # identity skip: residual add + final ReLU fused into conv3's epilogue.
    return conv1x1_in_relu(out, params["w3"], res=x, out_dtype=jnp.float32)


# ---------------------------------------------------------------------------
# Pure-JAX reference (mirrors the bf16 casts at the matmul boundaries)
# ---------------------------------------------------------------------------
def _bf16(x):
    return x.astype(jnp.bfloat16).astype(jnp.float32)


def _ref_bottleneck(x, params, stride=1, first=False):
    def conv(x, w, stride, pad):
        return jax.lax.conv_general_dilated(
            _bf16(x), _bf16(w), (stride, stride), [(pad, pad), (pad, pad)],
            dimension_numbers=("NHWC", "HWIO", "NHWC"))

    def in_relu(y):
        mean = jnp.mean(y, axis=(1, 2), keepdims=True)
        var = jnp.var(y, axis=(1, 2), keepdims=True)
        return jnp.maximum((y - mean) * jax.lax.rsqrt(var + EPS), 0.0)

    def bn_relu(y, g, b):
        mean = jnp.mean(y, axis=(0, 1, 2), keepdims=True)
        var = jnp.var(y, axis=(0, 1, 2), keepdims=True)
        return jnp.maximum((y - mean) * jax.lax.rsqrt(var + EPS) * g + b, 0.0)

    out = _bf16(in_relu(conv(x, params["w1"][None, None], 1, 0)))
    out = _bf16(in_relu(conv(out, params["w2"], stride, 1)))
    out = in_relu(conv(out, params["w3"][None, None], 1, 0))
    if stride != 1 or first:
        identity = bn_relu(conv(x, params["wd"][None, None], stride, 0),
                           params["gamma_d"], params["beta_d"])
    else:
        identity = _bf16(x)
    return jnp.maximum(out + identity, 0.0)


# ---------------------------------------------------------------------------
# main
# ---------------------------------------------------------------------------
if __name__ == "__main__":
    key = jax.random.PRNGKey(0)
    k_x, k_p1, k_p2, k_t1, k_t2, k_t3 = jax.random.split(key, 6)

    # Small shapes: batch=2, spatial 8x8, inplanes=8, planes=4 (expansion 4 -> 16)
    N, H, W, inplanes, planes = 2, 8, 8, 8, 4
    x = jax.random.normal(k_x, (N, H, W, inplanes), jnp.float32)

    # Block 1: stride=2, first=True -> downsample branch (1x1 conv + BN + ReLU)
    params1 = make_bottleneck_params(k_p1, inplanes, planes, stride=2, first=True)
    y1 = jax.block_until_ready(bottleneck_in_forward(x, params1, stride=2, first=True))
    assert y1.shape == (N, H // 2, W // 2, planes * 4), y1.shape

    # Block 2: stride=1, first=False -> identity skip fused into conv3 epilogue
    params2 = make_bottleneck_params(k_p2, planes * 4, planes, stride=1, first=False)
    y2 = jax.block_until_ready(bottleneck_in_forward(y1, params2, stride=1, first=False))
    assert y2.shape == y1.shape, y2.shape

    assert bool(jnp.all(jnp.isfinite(y1))) and bool(jnp.all(jnp.isfinite(y2)))
    assert bool(jnp.all(y1 >= 0)) and bool(jnp.all(y2 >= 0))  # final ReLU

    # Numerical check against a pure-JAX reference.
    r1 = _ref_bottleneck(x, params1, stride=2, first=True)
    r2 = _ref_bottleneck(y1, params2, stride=1, first=False)
    err1 = float(jnp.max(jnp.abs(y1 - r1)))
    err2 = float(jnp.max(jnp.abs(y2 - r2)))
    assert err1 < 0.15 and err2 < 0.15, (err1, err2)

    # Consistency check: fused single-pass vs. spatially tiled two-phase 1x1
    # path (exercises multi-tile P and multi-tile K with channel padding).
    xt = jax.random.normal(k_t1, (2, 24, 24, 640), jnp.float32)
    wt = 0.05 * jax.random.normal(k_t2, (640, 256), jnp.float32)
    rt = jax.random.normal(k_t3, (2, 24, 24, 256), jnp.float32)
    a = jax.block_until_ready(conv1x1_in_relu(xt, wt, res=rt, out_dtype=jnp.float32))
    b = jax.block_until_ready(conv1x1_in_relu(xt, wt, res=rt, out_dtype=jnp.float32,
                                              force_tiled=True))
    err3 = float(jnp.max(jnp.abs(a - b)))
    assert err3 < 0.08, err3

    # TODO(synk): BatchNorm running_mean/var buffers are not tracked (forward
    # uses training-mode batch statistics, matching nn.BatchNorm2d training).
    print("KERNEL_OK")
</pallas_src>

<mosaic_0001>
module attributes {stable_mosaic.version = 11 : i64} {
  func.func @_conv1x1_fused_kernel(%arg0: i32, %arg1: i32, %arg2: memref<1x64x8xbf16, #tpu.memory_space<vmem>>, %arg3: memref<8x4xbf16, #tpu.memory_space<vmem>>, %arg4: memref<1x64x4xbf16, #tpu.memory_space<vmem>>, %arg5: memref<64x4xf32, #tpu.memory_space<vmem>>) attributes {dimension_semantics = [#tpu.dimension_semantics<parallel>, #tpu.dimension_semantics<arbitrary>], iteration_bounds = array<i64: 2, 1>, scalar_prefetch = 0 : i64, scratch_operands = 1 : i64, tpu.core_type = #tpu.core_type<tc>, window_params = [{transform_indices = @transform_0, window_bounds = array<i64: 1, 64, 8>}, {transform_indices = @transform_1, window_bounds = array<i64: 8, 4>}, {transform_indices = @transform_2, window_bounds = array<i64: 1, 64, 4>}]} {
    %c0_i32 = arith.constant 0 : i32
    %0 = arith.cmpi eq, %arg1, %c0_i32 : i32
    %1 = arith.extui %0 : i1 to i32
    %c0_i32_0 = arith.constant 0 : i32
    %2 = arith.cmpi ne, %1, %c0_i32_0 : i32
    scf.if %2 {
      %cst_11 = arith.constant 0.000000e+00 : f32
      %13 = vector.broadcast %cst_11 : f32 to vector<64x4xf32>
      %c0_12 = arith.constant 0 : index
      %c0_13 = arith.constant 0 : index
      %14 = vector.load %arg5[%c0_12, %c0_13] : memref<64x4xf32, #tpu.memory_space<vmem>>, vector<64x4xf32>
      tpu.vector_store %arg5[%c0_12, %c0_13], %13 {strides = array<i32>} : memref<64x4xf32, #tpu.memory_space<vmem>>, vector<64x4xf32>,
    } else {
    }
    %c0 = arith.constant 0 : index
    %c0_1 = arith.constant 0 : index
    %3 = vector.load %arg5[%c0, %c0_1] : memref<64x4xf32, #tpu.memory_space<vmem>>, vector<64x4xf32>
    %c0_2 = arith.constant 0 : index
    %c0_3 = arith.constant 0 : index
    %c0_4 = arith.constant 0 : index
    %4 = vector.load %arg2[%c0_2, %c0_3, %c0_4] : memref<1x64x8xbf16, #tpu.memory_space<vmem>>, vector<1x64x8xbf16>
    %5 = vector.shape_cast %4 : vector<1x64x8xbf16> to vector<64x8xbf16>
    %c0_5 = arith.constant 0 : index
    %c0_6 = arith.constant 0 : index
    %6 = vector.load %arg3[%c0_5, %c0_6] : memref<8x4xbf16, #tpu.memory_space<vmem>>, vector<8x4xbf16>
    %cst = arith.constant dense<0.000000e+00> : vector<64x4xf32>
    %7 = tpu.matmul %5, %6, %cst {dimension_numbers = #tpu.dot_dimension_numbers<[1], [0], [0], [1], [0, 0, 1, 1], [], []>} : vector<64x8xbf16>, vector<8x4xbf16>, vector<64x4xf32> -> vector<64x4xf32>
    %8 = arith.addf %3, %7 : vector<64x4xf32>
    %c0_7 = arith.constant 0 : index
    %c0_8 = arith.constant 0 : index
    %9 = vector.load %arg5[%c0_7, %c0_8] : memref<64x4xf32, #tpu.memory_space<vmem>>, vector<64x4xf32>
    tpu.vector_store %arg5[%c0_7, %c0_8], %8 {strides = array<i32>} : memref<64x4xf32, #tpu.memory_space<vmem>>, vector<64x4xf32>,
    %c0_i32_9 = arith.constant 0 : i32
    %10 = arith.cmpi eq, %arg1, %c0_i32_9 : i32
    %11 = arith.extui %10 : i1 to i32
    %c0_i32_10 = arith.constant 0 : i32
    %12 = arith.cmpi ne, %11, %c0_i32_10 : i32
    scf.if %12 {
      %c0_11 = arith.constant 0 : index
      %c0_12 = arith.constant 0 : index
      %13 = vector.load %arg5[%c0_11, %c0_12] : memref<64x4xf32, #tpu.memory_space<vmem>>, vector<64x4xf32>
      %cst_13 = arith.constant dense<0.000000e+00> : vector<4xf32>
      %14 = vector.multi_reduction <add>, %13, %cst_13 [0] : vector<64x4xf32> to vector<4xf32>
      %15 = vector.shape_cast %14 : vector<4xf32> to vector<1x4xf32>
      %16 = arith.mulf %13, %13 : vector<64x4xf32>
      %cst_14 = arith.constant dense<0.000000e+00> : vector<4xf32>
      %17 = vector.multi_reduction <add>, %16, %cst_14 [0] : vector<64x4xf32> to vector<4xf32>
      %18 = vector.shape_cast %17 : vector<4xf32> to vector<1x4xf32>
      %cst_15 = arith.constant 1.562500e-02 : f32
      %19 = vector.broadcast %cst_15 : f32 to vector<1x4xf32>
      %20 = arith.mulf %15, %19 : vector<1x4xf32>
      %cst_16 = arith.constant 1.562500e-02 : f32
      %21 = vector.broadcast %cst_16 : f32 to vector<1x4xf32>
      %22 = arith.mulf %18, %21 : vector<1x4xf32>
      %23 = arith.mulf %20, %20 : vector<1x4xf32>
      %24 = arith.subf %22, %23 : vector<1x4xf32>
      %cst_17 = arith.constant 0.000000e+00 : f32
      %25 = vector.broadcast %cst_17 : f32 to vector<1x4xf32>
      %26 = arith.maximumf %24, %25 : vector<1x4xf32>
      %cst_18 = arith.constant 9.99999974E-6 : f32
      %27 = vector.broadcast %cst_18 : f32 to vector<1x4xf32>
      %28 = arith.addf %26, %27 : vector<1x4xf32>
      %29 = math.rsqrt %28 : vector<1x4xf32>
      %30 = vector.broadcast %20 : vector<1x4xf32> to vector<64x4xf32>
      %31 = arith.subf %13, %30 : vector<64x4xf32>
      %32 = vector.broadcast %29 : vector<1x4xf32> to vector<64x4xf32>
      %33 = arith.mulf %31, %32 : vector<64x4xf32>
      %cst_19 = arith.constant 0.000000e+00 : f32
      %34 = vector.broadcast %cst_19 : f32 to vector<64x4xf32>
      %35 = arith.maximumf %33, %34 : vector<64x4xf32>
      %36 = arith.truncf %35 : vector<64x4xf32> to vector<64x4xbf16>
      %c0_20 = arith.constant 0 : index
      %c0_21 = arith.constant 0 : index
      %c0_22 = arith.constant 0 : index
      %37 = vector.load %arg4[%c0_20, %c0_21, %c0_22] : memref<1x64x4xbf16, #tpu.memory_space<vmem>>, vector<1x64x4xbf16>
      %38 = vector.shape_cast %37 : vector<1x64x4xbf16> to vector<64x4xbf16>
      %39 = vector.shape_cast %36 : vector<64x4xbf16> to vector<1x64x4xbf16>
      tpu.vector_store %arg4[%c0_20, %c0_21, %c0_22], %39 {strides = array<i32>} : memref<1x64x4xbf16, #tpu.memory_space<vmem>>, vector<1x64x4xbf16>,
    } else {
    }
    return
  }
  func.func @transform_0(%arg0: i32, %arg1: i32) -> (i32, i32, i32) {
    %c0_i32 = arith.constant 0 : i32
    %c0_i32_0 = arith.constant 0 : i32
    return %arg0, %c0_i32, %arg1 : i32, i32, i32
  }
  func.func @transform_1(%arg0: i32, %arg1: i32) -> (i32, i32) {
    %c0_i32 = arith.constant 0 : i32
    %c0_i32_0 = arith.constant 0 : i32
    return %arg1, %c0_i32 : i32, i32
  }
  func.func @transform_2(%arg0: i32, %arg1: i32) -> (i32, i32, i32) {
    %c0_i32 = arith.constant 0 : i32
    %c0_i32_0 = arith.constant 0 : i32
    %c0_i32_1 = arith.constant 0 : i32
    return %arg0, %c0_i32, %c0_i32_0 : i32, i32, i32
  }
}

module attributes {stable_mosaic.version = 11 : i64} {
  func.func @_conv1x1_stats_kernel(%arg0: i32, %arg1: i32, %arg2: i32, %arg3: memref<1x16x8xbf16, #tpu.memory_space<vmem>>, %arg4: memref<8x16xbf16, #tpu.memory_space<vmem>>, %arg5: memref<1x16x16xbf16, #tpu.memory_space<vmem>>, %arg6: memref<1x1x16xf32, #tpu.memory_space<vmem>>, %arg7: memref<1x1x16xf32, #tpu.memory_space<vmem>>, %arg8: memref<16x16xf32, #tpu.memory_space<vmem>>) attributes {dimension_semantics = [#tpu.dimension_semantics<parallel>, #tpu.dimension_semantics<arbitrary>, #tpu.dimension_semantics<arbitrary>], iteration_bounds = array<i64: 2, 1, 1>, scalar_prefetch = 0 : i64, scratch_operands = 1 : i64, tpu.core_type = #tpu.core_type<tc>, window_params = [{transform_indices = @transform_0, window_bounds = array<i64: 1, 16, 8>}, {transform_indices = @transform_1, window_bounds = array<i64: 8, 16>}, {transform_indices = @transform_2, window_bounds = array<i64: 1, 16, 16>}, {transform_indices = @transform_3, window_bounds = array<i64: 1, 1, 16>}, {transform_indices = @transform_4, window_bounds = array<i64: 1, 1, 16>}]} {
    %c0_i32 = arith.constant 0 : i32
    %0 = arith.cmpi eq, %arg2, %c0_i32 : i32
    %1 = arith.extui %0 : i1 to i32
    %c0_i32_0 = arith.constant 0 : i32
    %2 = arith.cmpi ne, %1, %c0_i32_0 : i32
    scf.if %2 {
      %cst_14 = arith.constant 0.000000e+00 : f32
      %18 = vector.broadcast %cst_14 : f32 to vector<16x16xf32>
      %c0_15 = arith.constant 0 : index
      %c0_16 = arith.constant 0 : index
      %19 = vector.load %arg8[%c0_15, %c0_16] : memref<16x16xf32, #tpu.memory_space<vmem>>, vector<16x16xf32>
      tpu.vector_store %arg8[%c0_15, %c0_16], %18 {strides = array<i32>} : memref<16x16xf32, #tpu.memory_space<vmem>>, vector<16x16xf32>,
    } else {
    }
    %c0_i32_1 = arith.constant 0 : i32
    %3 = arith.cmpi eq, %arg1, %c0_i32_1 : i32
    %c0_i32_2 = arith.constant 0 : i32
    %4 = arith.cmpi eq, %arg2, %c0_i32_2 : i32
    %5 = arith.andi %3, %4 : i1
    %6 = arith.extui %5 : i1 to i32
    %c0_i32_3 = arith.constant 0 : i32
    %7 = arith.cmpi ne, %6, %c0_i32_3 : i32
    scf.if %7 {
      %cst_14 = arith.constant 0.000000e+00 : f32
      %18 = vector.broadcast %cst_14 : f32 to vector<1x1x16xf32>
      %c0_15 = arith.constant 0 : index
      %c0_16 = arith.constant 0 : index
      %c0_17 = arith.constant 0 : index
      %19 = vector.load %arg6[%c0_15, %c0_16, %c0_17] : memref<1x1x16xf32, #tpu.memory_space<vmem>>, vector<1x1x16xf32>
      tpu.vector_store %arg6[%c0_15, %c0_16, %c0_17], %18 {strides = array<i32>} : memref<1x1x16xf32, #tpu.memory_space<vmem>>, vector<1x1x16xf32>,
      %cst_18 = arith.constant 0.000000e+00 : f32
      %20 = vector.broadcast %cst_18 : f32 to vector<1x1x16xf32>
      %c0_19 = arith.constant 0 : index
      %c0_20 = arith.constant 0 : index
      %c0_21 = arith.constant 0 : index
      %21 = vector.load %arg7[%c0_19, %c0_20, %c0_21] : memref<1x1x16xf32, #tpu.memory_space<vmem>>, vector<1x1x16xf32>
      tpu.vector_store %arg7[%c0_19, %c0_20, %c0_21], %20 {strides = array<i32>} : memref<1x1x16xf32, #tpu.memory_space<vmem>>, vector<1x1x16xf32>,
    } else {
    }
    %c0 = arith.constant 0 : index
    %c0_4 = arith.constant 0 : index
    %8 = vector.load %arg8[%c0, %c0_4] : memref<16x16xf32, #tpu.memory_space<vmem>>, vector<16x16xf32>
    %c0_5 = arith.constant 0 : index
    %c0_6 = arith.constant 0 : index
    %c0_7 = arith.constant 0 : index
    %9 = vector.load %arg3[%c0_5, %c0_6, %c0_7] : memref<1x16x8xbf16, #tpu.memory_space<vmem>>, vector<1x16x8xbf16>
    %10 = vector.shape_cast %9 : vector<1x16x8xbf16> to vector<16x8xbf16>
    %c0_8 = arith.constant 0 : index
    %c0_9 = arith.constant 0 : index
    %11 = vector.load %arg4[%c0_8, %c0_9] : memref<8x16xbf16, #tpu.memory_space<vmem>>, vector<8x16xbf16>
    %cst = arith.constant dense<0.000000e+00> : vector<16x16xf32>
    %12 = tpu.matmul %10, %11, %cst {dimension_numbers = #tpu.dot_dimension_numbers<[1], [0], [0], [1], [0, 0, 1, 1], [], []>} : vector<16x8xbf16>, vector<8x16xbf16>, vector<16x16xf32> -> vector<16x16xf32>
    %13 = arith.addf %8, %12 : vector<16x16xf32>
    %c0_10 = arith.constant 0 : index
    %c0_11 = arith.constant 0 : index
    %14 = vector.load %arg8[%c0_10, %c0_11] : memref<16x16xf32, #tpu.memory_space<vmem>>, vector<16x16xf32>
    tpu.vector_store %arg8[%c0_10, %c0_11], %13 {strides = array<i32>} : memref<16x16xf32, #tpu.memory_space<vmem>>, vector<16x16xf32>,
    %c0_i32_12 = arith.constant 0 : i32
    %15 = arith.cmpi eq, %arg2, %c0_i32_12 : i32
    %16 = arith.extui %15 : i1 to i32
    %c0_i32_13 = arith.constant 0 : i32
    %17 = arith.cmpi ne, %16, %c0_i32_13 : i32
    scf.if %17 {
      %c0_14 = arith.constant 0 : index
      %c0_15 = arith.constant 0 : index
      %18 = vector.load %arg8[%c0_14, %c0_15] : memref<16x16xf32, #tpu.memory_space<vmem>>, vector<16x16xf32>
      %19 = arith.truncf %18 : vector<16x16xf32> to vector<16x16xbf16>
      %c0_16 = arith.constant 0 : index
      %c0_17 = arith.constant 0 : index
      %c0_18 = arith.constant 0 : index
      %20 = vector.load %arg5[%c0_16, %c0_17, %c0_18] : memref<1x16x16xbf16, #tpu.memory_space<vmem>>, vector<1x16x16xbf16>
      %21 = vector.shape_cast %20 : vector<1x16x16xbf16> to vector<16x16xbf16>
      %22 = vector.shape_cast %19 : vector<16x16xbf16> to vector<1x16x16xbf16>
      tpu.vector_store %arg5[%c0_16, %c0_17, %c0_18], %22 {strides = array<i32>} : memref<1x16x16xbf16, #tpu.memory_space<vmem>>, vector<1x16x16xbf16>,
      %c0_19 = arith.constant 0 : index
      %c0_20 = arith.constant 0 : index
      %c0_21 = arith.constant 0 : index
      %23 = vector.load %arg6[%c0_19, %c0_20, %c0_21] : memref<1x1x16xf32, #tpu.memory_space<vmem>>, vector<1x1x16xf32>
      %cst_22 = arith.constant dense<0.000000e+00> : vector<16xf32>
      %24 = vector.multi_reduction <add>, %18, %cst_22 [0] : vector<16x16xf32> to vector<16xf32>
      %25 = vector.shape_cast %24 : vector<16xf32> to vector<1x1x16xf32>
      %26 = arith.addf %23, %25 : vector<1x1x16xf32>
      %c0_23 = arith.constant 0 : index
      %c0_24 = arith.constant 0 : index
      %c0_25 = arith.constant 0 : index
      %27 = vector.load %arg6[%c0_23, %c0_24, %c0_25] : memref<1x1x16xf32, #tpu.memory_space<vmem>>, vector<1x1x16xf32>
      tpu.vector_store %arg6[%c0_23, %c0_24, %c0_25], %26 {strides = array<i32>} : memref<1x1x16xf32, #tpu.memory_space<vmem>>, vector<1x1x16xf32>,
      %c0_26 = arith.constant 0 : index
      %c0_27 = arith.constant 0 : index
      %c0_28 = arith.constant 0 : index
      %28 = vector.load %arg7[%c0_26, %c0_27, %c0_28] : memref<1x1x16xf32, #tpu.memory_space<vmem>>, vector<1x1x16xf32>
      %29 = arith.mulf %18, %18 : vector<16x16xf32>
      %cst_29 = arith.constant dense<0.000000e+00> : vector<16xf32>
      %30 = vector.multi_reduction <add>, %29, %cst_29 [0] : vector<16x16xf32> to vector<16xf32>
      %31 = vector.shape_cast %30 : vector<16xf32> to vector<1x1x16xf32>
      %32 = arith.addf %28, %31 : vector<1x1x16xf32>
      %c0_30 = arith.constant 0 : index
      %c0_31 = arith.constant 0 : index
      %c0_32 = arith.constant 0 : index
      %33 = vector.load %arg7[%c0_30, %c0_31, %c0_32] : memref<1x1x16xf32, #tpu.memory_space<vmem>>, vector<1x1x16xf32>
      tpu.vector_store %arg7[%c0_30, %c0_31, %c0_32], %32 {strides = array<i32>} : memref<1x1x16xf32, #tpu.memory_space<vmem>>, vector<1x1x16xf32>,
    } else {
    }
    return
  }
  func.func @transform_0(%arg0: i32, %arg1: i32, %arg2: i32) -> (i32, i32, i32) {
    %c0_i32 = arith.constant 0 : i32
    return %arg0, %arg1, %arg2 : i32, i32, i32
  }
  func.func @transform_1(%arg0: i32, %arg1: i32, %arg2: i32) -> (i32, i32) {
    %c0_i32 = arith.constant 0 : i32
    %c0_i32_0 = arith.constant 0 : i32
    return %arg2, %c0_i32 : i32, i32
  }
  func.func @transform_2(%arg0: i32, %arg1: i32, %arg2: i32) -> (i32, i32, i32) {
    %c0_i32 = arith.constant 0 : i32
    %c0_i32_0 = arith.constant 0 : i32
    return %arg0, %arg1, %c0_i32 : i32, i32, i32
  }
  func.func @transform_3(%arg0: i32, %arg1: i32, %arg2: i32) -> (i32, i32, i32) {
    %c0_i32 = arith.constant 0 : i32
    %c0_i32_0 = arith.constant 0 : i32
    %c0_i32_1 = arith.constant 0 : i32
    return %arg0, %c0_i32, %c0_i32_0 : i32, i32, i32
  }
  func.func @transform_4(%arg0: i32, %arg1: i32, %arg2: i32) -> (i32, i32, i32) {
    %c0_i32 = arith.constant 0 : i32
    %c0_i32_0 = arith.constant 0 : i32
    %c0_i32_1 = arith.constant 0 : i32
    return %arg0, %c0_i32, %c0_i32_0 : i32, i32, i32
  }
}

module attributes {stable_mosaic.version = 11 : i64} {
  func.func @_conv1x1_fused_kernel(%arg0: i32, %arg1: i32, %arg2: memref<1x16x4xbf16, #tpu.memory_space<vmem>>, %arg3: memref<4x16xbf16, #tpu.memory_space<vmem>>, %arg4: memref<1x16x16xbf16, #tpu.memory_space<vmem>>, %arg5: memref<16x16xf32, #tpu.memory_space<vmem>>) attributes {dimension_semantics = [#tpu.dimension_semantics<parallel>, #tpu.dimension_semantics<arbitrary>], iteration_bounds = array<i64: 2, 1>, scalar_prefetch = 0 : i64, scratch_operands = 1 : i64, tpu.core_type = #tpu.core_type<tc>, window_params = [{transform_indices = @transform_0, window_bounds = array<i64: 1, 16, 4>}, {transform_indices = @transform_1, window_bounds = array<i64: 4, 16>}, {transform_indices = @transform_2, window_bounds = array<i64: 1, 16, 16>}]} {
    %c0_i32 = arith.constant 0 : i32
    %0 = arith.cmpi eq, %arg1, %c0_i32 : i32
    %1 = arith.extui %0 : i1 to i32
    %c0_i32_0 = arith.constant 0 : i32
    %2 = arith.cmpi ne, %1, %c0_i32_0 : i32
    scf.if %2 {
      %cst_11 = arith.constant 0.000000e+00 : f32
      %13 = vector.broadcast %cst_11 : f32 to vector<16x16xf32>
      %c0_12 = arith.constant 0 : index
      %c0_13 = arith.constant 0 : index
      %14 = vector.load %arg5[%c0_12, %c0_13] : memref<16x16xf32, #tpu.memory_space<vmem>>, vector<16x16xf32>
      tpu.vector_store %arg5[%c0_12, %c0_13], %13 {strides = array<i32>} : memref<16x16xf32, #tpu.memory_space<vmem>>, vector<16x16xf32>,
    } else {
    }
    %c0 = arith.constant 0 : index
    %c0_1 = arith.constant 0 : index
    %3 = vector.load %arg5[%c0, %c0_1] : memref<16x16xf32, #tpu.memory_space<vmem>>, vector<16x16xf32>
    %c0_2 = arith.constant 0 : index
    %c0_3 = arith.constant 0 : index
    %c0_4 = arith.constant 0 : index
    %4 = vector.load %arg2[%c0_2, %c0_3, %c0_4] : memref<1x16x4xbf16, #tpu.memory_space<vmem>>, vector<1x16x4xbf16>
    %5 = vector.shape_cast %4 : vector<1x16x4xbf16> to vector<16x4xbf16>
    %c0_5 = arith.constant 0 : index
    %c0_6 = arith.constant 0 : index
    %6 = vector.load %arg3[%c0_5, %c0_6] : memref<4x16xbf16, #tpu.memory_space<vmem>>, vector<4x16xbf16>
    %cst = arith.constant dense<0.000000e+00> : vector<16x16xf32>
    %7 = tpu.matmul %5, %6, %cst {dimension_numbers = #tpu.dot_dimension_numbers<[1], [0], [0], [1], [0, 0, 1, 1], [], []>} : vector<16x4xbf16>, vector<4x16xbf16>, vector<16x16xf32> -> vector<16x16xf32>
    %8 = arith.addf %3, %7 : vector<16x16xf32>
    %c0_7 = arith.constant 0 : index
    %c0_8 = arith.constant 0 : index
    %9 = vector.load %arg5[%c0_7, %c0_8] : memref<16x16xf32, #tpu.memory_space<vmem>>, vector<16x16xf32>
    tpu.vector_store %arg5[%c0_7, %c0_8], %8 {strides = array<i32>} : memref<16x16xf32, #tpu.memory_space<vmem>>, vector<16x16xf32>,
    %c0_i32_9 = arith.constant 0 : i32
    %10 = arith.cmpi eq, %arg1, %c0_i32_9 : i32
    %11 = arith.extui %10 : i1 to i32
    %c0_i32_10 = arith.constant 0 : i32
    %12 = arith.cmpi ne, %11, %c0_i32_10 : i32
    scf.if %12 {
      %c0_11 = arith.constant 0 : index
      %c0_12 = arith.constant 0 : index
      %13 = vector.load %arg5[%c0_11, %c0_12] : memref<16x16xf32, #tpu.memory_space<vmem>>, vector<16x16xf32>
      %cst_13 = arith.constant dense<0.000000e+00> : vector<16xf32>
      %14 = vector.multi_reduction <add>, %13, %cst_13 [0] : vector<16x16xf32> to vector<16xf32>
      %15 = vector.shape_cast %14 : vector<16xf32> to vector<1x16xf32>
      %16 = arith.mulf %13, %13 : vector<16x16xf32>
      %cst_14 = arith.constant dense<0.000000e+00> : vector<16xf32>
      %17 = vector.multi_reduction <add>, %16, %cst_14 [0] : vector<16x16xf32> to vector<16xf32>
      %18 = vector.shape_cast %17 : vector<16xf32> to vector<1x16xf32>
      %cst_15 = arith.constant 6.250000e-02 : f32
      %19 = vector.broadcast %cst_15 : f32 to vector<1x16xf32>
      %20 = arith.mulf %15, %19 : vector<1x16xf32>
      %cst_16 = arith.constant 6.250000e-02 : f32
      %21 = vector.broadcast %cst_16 : f32 to vector<1x16xf32>
      %22 = arith.mulf %18, %21 : vector<1x16xf32>
      %23 = arith.mulf %20, %20 : vector<1x16xf32>
      %24 = arith.subf %22, %23 : vector<1x16xf32>
      %cst_17 = arith.constant 0.000000e+00 : f32
      %25 = vector.broadcast %cst_17 : f32 to vector<1x16xf32>
      %26 = arith.maximumf %24, %25 : vector<1x16xf32>
      %cst_18 = arith.constant 9.99999974E-6 : f32
      %27 = vector.broadcast %cst_18 : f32 to vector<1x16xf32>
      %28 = arith.addf %26, %27 : vector<1x16xf32>
      %29 = math.rsqrt %28 : vector<1x16xf32>
      %30 = vector.broadcast %20 : vector<1x16xf32> to vector<16x16xf32>
      %31 = arith.subf %13, %30 : vector<16x16xf32>
      %32 = vector.broadcast %29 : vector<1x16xf32> to vector<16x16xf32>
      %33 = arith.mulf %31, %32 : vector<16x16xf32>
      %cst_19 = arith.constant 0.000000e+00 : f32
      %34 = vector.broadcast %cst_19 : f32 to vector<16x16xf32>
      %35 = arith.maximumf %33, %34 : vector<16x16xf32>
      %36 = arith.truncf %35 : vector<16x16xf32> to vector<16x16xbf16>
      %c0_20 = arith.constant 0 : index
      %c0_21 = arith.constant 0 : index
      %c0_22 = arith.constant 0 : index
      %37 = vector.load %arg4[%c0_20, %c0_21, %c0_22] : memref<1x16x16xbf16, #tpu.memory_space<vmem>>, vector<1x16x16xbf16>
      %38 = vector.shape_cast %37 : vector<1x16x16xbf16> to vector<16x16xbf16>
      %39 = vector.shape_cast %36 : vector<16x16xbf16> to vector<1x16x16xbf16>
      tpu.vector_store %arg4[%c0_20, %c0_21, %c0_22], %39 {strides = array<i32>} : memref<1x16x16xbf16, #tpu.memory_space<vmem>>, vector<1x16x16xbf16>,
    } else {
    }
    return
  }
  func.func @transform_0(%arg0: i32, %arg1: i32) -> (i32, i32, i32) {
    %c0_i32 = arith.constant 0 : i32
    %c0_i32_0 = arith.constant 0 : i32
    return %arg0, %c0_i32, %arg1 : i32, i32, i32
  }
  func.func @transform_1(%arg0: i32, %arg1: i32) -> (i32, i32) {
    %c0_i32 = arith.constant 0 : i32
    %c0_i32_0 = arith.constant 0 : i32
    return %arg1, %c0_i32 : i32, i32
  }
  func.func @transform_2(%arg0: i32, %arg1: i32) -> (i32, i32, i32) {
    %c0_i32 = arith.constant 0 : i32
    %c0_i32_0 = arith.constant 0 : i32
    %c0_i32_1 = arith.constant 0 : i32
    return %arg0, %c0_i32, %c0_i32_0 : i32, i32, i32
  }
}

module attributes {stable_mosaic.version = 11 : i64} {
  func.func @_conv1x1_fused_kernel(%arg0: i32, %arg1: i32, %arg2: memref<1x16x36xbf16, #tpu.memory_space<vmem>>, %arg3: memref<36x4xbf16, #tpu.memory_space<vmem>>, %arg4: memref<1x16x4xbf16, #tpu.memory_space<vmem>>, %arg5: memref<16x4xf32, #tpu.memory_space<vmem>>) attributes {dimension_semantics = [#tpu.dimension_semantics<parallel>, #tpu.dimension_semantics<arbitrary>], iteration_bounds = array<i64: 2, 1>, scalar_prefetch = 0 : i64, scratch_operands = 1 : i64, tpu.core_type = #tpu.core_type<tc>, window_params = [{transform_indices = @transform_0, window_bounds = array<i64: 1, 16, 36>}, {transform_indices = @transform_1, window_bounds = array<i64: 36, 4>}, {transform_indices = @transform_2, window_bounds = array<i64: 1, 16, 4>}]} {
    %c0_i32 = arith.constant 0 : i32
    %0 = arith.cmpi eq, %arg1, %c0_i32 : i32
    %1 = arith.extui %0 : i1 to i32
    %c0_i32_0 = arith.constant 0 : i32
    %2 = arith.cmpi ne, %1, %c0_i32_0 : i32
    scf.if %2 {
      %cst_11 = arith.constant 0.000000e+00 : f32
      %13 = vector.broadcast %cst_11 : f32 to vector<16x4xf32>
      %c0_12 = arith.constant 0 : index
      %c0_13 = arith.constant 0 : index
      %14 = vector.load %arg5[%c0_12, %c0_13] : memref<16x4xf32, #tpu.memory_space<vmem>>, vector<16x4xf32>
      tpu.vector_store %arg5[%c0_12, %c0_13], %13 {strides = array<i32>} : memref<16x4xf32, #tpu.memory_space<vmem>>, vector<16x4xf32>,
    } else {
    }
    %c0 = arith.constant 0 : index
    %c0_1 = arith.constant 0 : index
    %3 = vector.load %arg5[%c0, %c0_1] : memref<16x4xf32, #tpu.memory_space<vmem>>, vector<16x4xf32>
    %c0_2 = arith.constant 0 : index
    %c0_3 = arith.constant 0 : index
    %c0_4 = arith.constant 0 : index
    %4 = vector.load %arg2[%c0_2, %c0_3, %c0_4] : memref<1x16x36xbf16, #tpu.memory_space<vmem>>, vector<1x16x36xbf16>
    %5 = vector.shape_cast %4 : vector<1x16x36xbf16> to vector<16x36xbf16>
    %c0_5 = arith.constant 0 : index
    %c0_6 = arith.constant 0 : index
    %6 = vector.load %arg3[%c0_5, %c0_6] : memref<36x4xbf16, #tpu.memory_space<vmem>>, vector<36x4xbf16>
    %cst = arith.constant dense<0.000000e+00> : vector<16x4xf32>
    %7 = tpu.matmul %5, %6, %cst {dimension_numbers = #tpu.dot_dimension_numbers<[1], [0], [0], [1], [0, 0, 1, 1], [], []>} : vector<16x36xbf16>, vector<36x4xbf16>, vector<16x4xf32> -> vector<16x4xf32>
    %8 = arith.addf %3, %7 : vector<16x4xf32>
    %c0_7 = arith.constant 0 : index
    %c0_8 = arith.constant 0 : index
    %9 = vector.load %arg5[%c0_7, %c0_8] : memref<16x4xf32, #tpu.memory_space<vmem>>, vector<16x4xf32>
    tpu.vector_store %arg5[%c0_7, %c0_8], %8 {strides = array<i32>} : memref<16x4xf32, #tpu.memory_space<vmem>>, vector<16x4xf32>,
    %c0_i32_9 = arith.constant 0 : i32
    %10 = arith.cmpi eq, %arg1, %c0_i32_9 : i32
    %11 = arith.extui %10 : i1 to i32
    %c0_i32_10 = arith.constant 0 : i32
    %12 = arith.cmpi ne, %11, %c0_i32_10 : i32
    scf.if %12 {
      %c0_11 = arith.constant 0 : index
      %c0_12 = arith.constant 0 : index
      %13 = vector.load %arg5[%c0_11, %c0_12] : memref<16x4xf32, #tpu.memory_space<vmem>>, vector<16x4xf32>
      %cst_13 = arith.constant dense<0.000000e+00> : vector<4xf32>
      %14 = vector.multi_reduction <add>, %13, %cst_13 [0] : vector<16x4xf32> to vector<4xf32>
      %15 = vector.shape_cast %14 : vector<4xf32> to vector<1x4xf32>
      %16 = arith.mulf %13, %13 : vector<16x4xf32>
      %cst_14 = arith.constant dense<0.000000e+00> : vector<4xf32>
      %17 = vector.multi_reduction <add>, %16, %cst_14 [0] : vector<16x4xf32> to vector<4xf32>
      %18 = vector.shape_cast %17 : vector<4xf32> to vector<1x4xf32>
      %cst_15 = arith.constant 6.250000e-02 : f32
      %19 = vector.broadcast %cst_15 : f32 to vector<1x4xf32>
      %20 = arith.mulf %15, %19 : vector<1x4xf32>
      %cst_16 = arith.constant 6.250000e-02 : f32
      %21 = vector.broadcast %cst_16 : f32 to vector<1x4xf32>
      %22 = arith.mulf %18, %21 : vector<1x4xf32>
      %23 = arith.mulf %20, %20 : vector<1x4xf32>
      %24 = arith.subf %22, %23 : vector<1x4xf32>
      %cst_17 = arith.constant 0.000000e+00 : f32
      %25 = vector.broadcast %cst_17 : f32 to vector<1x4xf32>
      %26 = arith.maximumf %24, %25 : vector<1x4xf32>
      %cst_18 = arith.constant 9.99999974E-6 : f32
      %27 = vector.broadcast %cst_18 : f32 to vector<1x4xf32>
      %28 = arith.addf %26, %27 : vector<1x4xf32>
      %29 = math.rsqrt %28 : vector<1x4xf32>
      %30 = vector.broadcast %20 : vector<1x4xf32> to vector<16x4xf32>
      %31 = arith.subf %13, %30 : vector<16x4xf32>
      %32 = vector.broadcast %29 : vector<1x4xf32> to vector<16x4xf32>
      %33 = arith.mulf %31, %32 : vector<16x4xf32>
      %cst_19 = arith.constant 0.000000e+00 : f32
      %34 = vector.broadcast %cst_19 : f32 to vector<16x4xf32>
      %35 = arith.maximumf %33, %34 : vector<16x4xf32>
      %36 = arith.truncf %35 : vector<16x4xf32> to vector<16x4xbf16>
      %c0_20 = arith.constant 0 : index
      %c0_21 = arith.constant 0 : index
      %c0_22 = arith.constant 0 : index
      %37 = vector.load %arg4[%c0_20, %c0_21, %c0_22] : memref<1x16x4xbf16, #tpu.memory_space<vmem>>, vector<1x16x4xbf16>
      %38 = vector.shape_cast %37 : vector<1x16x4xbf16> to vector<16x4xbf16>
      %39 = vector.shape_cast %36 : vector<16x4xbf16> to vector<1x16x4xbf16>
      tpu.vector_store %arg4[%c0_20, %c0_21, %c0_22], %39 {strides = array<i32>} : memref<1x16x4xbf16, #tpu.memory_space<vmem>>, vector<1x16x4xbf16>,
    } else {
    }
    return
  }
  func.func @transform_0(%arg0: i32, %arg1: i32) -> (i32, i32, i32) {
    %c0_i32 = arith.constant 0 : i32
    %c0_i32_0 = arith.constant 0 : i32
    return %arg0, %c0_i32, %arg1 : i32, i32, i32
  }
  func.func @transform_1(%arg0: i32, %arg1: i32) -> (i32, i32) {
    %c0_i32 = arith.constant 0 : i32
    %c0_i32_0 = arith.constant 0 : i32
    return %arg1, %c0_i32 : i32, i32
  }
  func.func @transform_2(%arg0: i32, %arg1: i32) -> (i32, i32, i32) {
    %c0_i32 = arith.constant 0 : i32
    %c0_i32_0 = arith.constant 0 : i32
    %c0_i32_1 = arith.constant 0 : i32
    return %arg0, %c0_i32, %c0_i32_0 : i32, i32, i32
  }
}

module attributes {stable_mosaic.version = 11 : i64} {
  func.func @_bn_add_relu_kernel(%arg0: i32, %arg1: i32, %arg2: memref<1x16x16xbf16, #tpu.memory_space<vmem>>, %arg3: memref<1x16x16xbf16, #tpu.memory_space<vmem>>, %arg4: memref<1x1x16xf32, #tpu.memory_space<vmem>>, %arg5: memref<1x1x16xf32, #tpu.memory_space<vmem>>, %arg6: memref<1x1x16xf32, #tpu.memory_space<vmem>>, %arg7: memref<1x1x16xf32, #tpu.memory_space<vmem>>, %arg8: memref<1x16x16xf32, #tpu.memory_space<vmem>>) attributes {dimension_semantics = [#tpu.dimension_semantics<parallel>, #tpu.dimension_semantics<parallel>], iteration_bounds = array<i64: 2, 1>, scalar_prefetch = 0 : i64, scratch_operands = 0 : i64, tpu.core_type = #tpu.core_type<tc>, window_params = [{transform_indices = @transform_0, window_bounds = array<i64: 1, 16, 16>}, {transform_indices = @transform_1, window_bounds = array<i64: 1, 16, 16>}, {pipeline_mode = #tpu.pipeline_mode<synchronous>, transform_indices = @transform_2, window_bounds = array<i64: 1, 1, 16>}, {pipeline_mode = #tpu.pipeline_mode<synchronous>, transform_indices = @transform_3, window_bounds = array<i64: 1, 1, 16>}, {pipeline_mode = #tpu.pipeline_mode<synchronous>, transform_indices = @transform_4, window_bounds = array<i64: 1, 1, 16>}, {pipeline_mode = #tpu.pipeline_mode<synchronous>, transform_indices = @transform_5, window_bounds = array<i64: 1, 1, 16>}, {transform_indices = @transform_6, window_bounds = array<i64: 1, 16, 16>}]} {
    %c0 = arith.constant 0 : index
    %c0_0 = arith.constant 0 : index
    %c0_1 = arith.constant 0 : index
    %0 = vector.load %arg4[%c0, %c0_0, %c0_1] : memref<1x1x16xf32, #tpu.memory_space<vmem>>, vector<1x1x16xf32>
    %1 = vector.shape_cast %0 : vector<1x1x16xf32> to vector<1x16xf32>
    %c0_2 = arith.constant 0 : index
    %c0_3 = arith.constant 0 : index
    %c0_4 = arith.constant 0 : index
    %2 = vector.load %arg5[%c0_2, %c0_3, %c0_4] : memref<1x1x16xf32, #tpu.memory_space<vmem>>, vector<1x1x16xf32>
    %3 = vector.shape_cast %2 : vector<1x1x16xf32> to vector<1x16xf32>
    %cst = arith.constant 3.125000e-02 : f32
    %4 = vector.broadcast %cst : f32 to vector<1x16xf32>
    %5 = arith.mulf %1, %4 : vector<1x16xf32>
    %cst_5 = arith.constant 3.125000e-02 : f32
    %6 = vector.broadcast %cst_5 : f32 to vector<1x16xf32>
    %7 = arith.mulf %3, %6 : vector<1x16xf32>
    %8 = arith.mulf %5, %5 : vector<1x16xf32>
    %9 = arith.subf %7, %8 : vector<1x16xf32>
    %cst_6 = arith.constant 0.000000e+00 : f32
    %10 = vector.broadcast %cst_6 : f32 to vector<1x16xf32>
    %11 = arith.maximumf %9, %10 : vector<1x16xf32>
    %cst_7 = arith.constant 9.99999974E-6 : f32
    %12 = vector.broadcast %cst_7 : f32 to vector<1x16xf32>
    %13 = arith.addf %11, %12 : vector<1x16xf32>
    %14 = math.rsqrt %13 : vector<1x16xf32>
    %c0_8 = arith.constant 0 : index
    %c0_9 = arith.constant 0 : index
    %c0_10 = arith.constant 0 : index
    %15 = vector.load %arg3[%c0_8, %c0_9, %c0_10] : memref<1x16x16xbf16, #tpu.memory_space<vmem>>, vector<1x16x16xbf16>
    %16 = vector.shape_cast %15 : vector<1x16x16xbf16> to vector<16x16xbf16>
    %17 = arith.extf %16 : vector<16x16xbf16> to vector<16x16xf32>
    %18 = vector.broadcast %5 : vector<1x16xf32> to vector<16x16xf32>
    %19 = arith.subf %17, %18 : vector<16x16xf32>
    %20 = vector.broadcast %14 : vector<1x16xf32> to vector<16x16xf32>
    %21 = arith.mulf %19, %20 : vector<16x16xf32>
    %c0_11 = arith.constant 0 : index
    %c0_12 = arith.constant 0 : index
    %c0_13 = arith.constant 0 : index
    %22 = vector.load %arg6[%c0_11, %c0_12, %c0_13] : memref<1x1x16xf32, #tpu.memory_space<vmem>>, vector<1x1x16xf32>
    %23 = vector.shape_cast %22 : vector<1x1x16xf32> to vector<1x16xf32>
    %24 = vector.broadcast %23 : vector<1x16xf32> to vector<16x16xf32>
    %25 = arith.mulf %21, %24 : vector<16x16xf32>
    %c0_14 = arith.constant 0 : index
    %c0_15 = arith.constant 0 : index
    %c0_16 = arith.constant 0 : index
    %26 = vector.load %arg7[%c0_14, %c0_15, %c0_16] : memref<1x1x16xf32, #tpu.memory_space<vmem>>, vector<1x1x16xf32>
    %27 = vector.shape_cast %26 : vector<1x1x16xf32> to vector<1x16xf32>
    %28 = vector.broadcast %27 : vector<1x16xf32> to vector<16x16xf32>
    %29 = arith.addf %25, %28 : vector<16x16xf32>
    %cst_17 = arith.constant 0.000000e+00 : f32
    %30 = vector.broadcast %cst_17 : f32 to vector<16x16xf32>
    %31 = arith.maximumf %29, %30 : vector<16x16xf32>
    %c0_18 = arith.constant 0 : index
    %c0_19 = arith.constant 0 : index
    %c0_20 = arith.constant 0 : index
    %32 = vector.load %arg2[%c0_18, %c0_19, %c0_20] : memref<1x16x16xbf16, #tpu.memory_space<vmem>>, vector<1x16x16xbf16>
    %33 = vector.shape_cast %32 : vector<1x16x16xbf16> to vector<16x16xbf16>
    %34 = arith.extf %33 : vector<16x16xbf16> to vector<16x16xf32>
    %35 = arith.addf %34, %31 : vector<16x16xf32>
    %cst_21 = arith.constant 0.000000e+00 : f32
    %36 = vector.broadcast %cst_21 : f32 to vector<16x16xf32>
    %37 = arith.maximumf %35, %36 : vector<16x16xf32>
    %c0_22 = arith.constant 0 : index
    %c0_23 = arith.constant 0 : index
    %c0_24 = arith.constant 0 : index
    %38 = vector.load %arg8[%c0_22, %c0_23, %c0_24] : memref<1x16x16xf32, #tpu.memory_space<vmem>>, vector<1x16x16xf32>
    %39 = vector.shape_cast %38 : vector<1x16x16xf32> to vector<16x16xf32>
    %40 = vector.shape_cast %37 : vector<16x16xf32> to vector<1x16x16xf32>
    tpu.vector_store %arg8[%c0_22, %c0_23, %c0_24], %40 {strides = array<i32>} : memref<1x16x16xf32, #tpu.memory_space<vmem>>, vector<1x16x16xf32>,
    return
  }
  func.func @transform_0(%arg0: i32, %arg1: i32) -> (i32, i32, i32) {
    %c0_i32 = arith.constant 0 : i32
    %c0_i32_0 = arith.constant 0 : i32
    return %arg0, %arg1, %c0_i32 : i32, i32, i32
  }
  func.func @transform_1(%arg0: i32, %arg1: i32) -> (i32, i32, i32) {
    %c0_i32 = arith.constant 0 : i32
    %c0_i32_0 = arith.constant 0 : i32
    return %arg0, %arg1, %c0_i32 : i32, i32, i32
  }
  func.func @transform_2(%arg0: i32, %arg1: i32) -> (i32, i32, i32) {
    %c0_i32 = arith.constant 0 : i32
    %c0_i32_0 = arith.constant 0 : i32
    %c0_i32_1 = arith.constant 0 : i32
    %c0_i32_2 = arith.constant 0 : i32
    return %c0_i32, %c0_i32_0, %c0_i32_1 : i32, i32, i32
  }
  func.func @transform_3(%arg0: i32, %arg1: i32) -> (i32, i32, i32) {
    %c0_i32 = arith.constant 0 : i32
    %c0_i32_0 = arith.constant 0 : i32
    %c0_i32_1 = arith.constant 0 : i32
    %c0_i32_2 = arith.constant 0 : i32
    return %c0_i32, %c0_i32_0, %c0_i32_1 : i32, i32, i32
  }
  func.func @transform_4(%arg0: i32, %arg1: i32) -> (i32, i32, i32) {
    %c0_i32 = arith.constant 0 : i32
    %c0_i32_0 = arith.constant 0 : i32
    %c0_i32_1 = arith.constant 0 : i32
    %c0_i32_2 = arith.constant 0 : i32
    return %c0_i32, %c0_i32_0, %c0_i32_1 : i32, i32, i32
  }
  func.func @transform_5(%arg0: i32, %arg1: i32) -> (i32, i32, i32) {
    %c0_i32 = arith.constant 0 : i32
    %c0_i32_0 = arith.constant 0 : i32
    %c0_i32_1 = arith.constant 0 : i32
    %c0_i32_2 = arith.constant 0 : i32
    return %c0_i32, %c0_i32_0, %c0_i32_1 : i32, i32, i32
  }
  func.func @transform_6(%arg0: i32, %arg1: i32) -> (i32, i32, i32) {
    %c0_i32 = arith.constant 0 : i32
    %c0_i32_0 = arith.constant 0 : i32
    return %arg0, %arg1, %c0_i32 : i32, i32, i32
  }
}

</mosaic_0001>

<llo_original>
// kernel: bottleneck_in_forward.8
$region0: #{bottleneck_in_forward.8}
  #allocation0 [shape = 'u32[]', space=smem, size = 0x4, offset = 0x4, fixed_abs, tag = 'smem constant byte address 0x4 - core index']
  #allocation1 [shape = 'u32[144,128]{1,0:T(1,128)}', space=vmem, size = 0x12000, scoped, tag = 'internal scratch']
  #allocation2 [shape = 'f32[16,16]{1,0:T(8,128)}', space=vmem, size = 0x2000, scoped, tag = 'scratch operand']
  %s0 = inlined_call_operand.vmem [shape: bf16[2,16,8], index: 0, kind: input, shape index: {}]
  %s1 = inlined_call_operand.vmem [shape: bf16[8,16], index: 1, kind: input, shape index: {}]
  %s2 = inlined_call_operand.vmem [shape: bf16[2,16,16], index: 2, kind: output, shape index: {0}]
  %s3 = inlined_call_operand.vmem [shape: f32[2,1,16], index: 3, kind: output, shape index: {1}]
  %s4 = inlined_call_operand.vmem [shape: f32[2,1,16], index: 4, kind: output, shape index: {2}]
  %5 = xla_tuple %s2, %s3, %s4
  %s6 = sld [smem:[#allocation0]]
  $region69: #{bottleneck_in_forward.8} parent=0
    _
  %s8 = ssub.s32 1, %s6
  %s9 = scalar_select 0, %s8, %s6
  loop: start=0, step=1, limit=4
  $region2: #{bottleneck_in_forward.8} parent=0 // loop_pre_header
    _
  $region3: #{bottleneck_in_forward.8} parent=0 // loop_header
    %s11 = sphi 0, %s15
    %p12 = scmp.ge.s32.totalorder %s11, 4
    %s18 = sphi 0, %s37
    %s19 = sphi 0, %s33
    %s20 = sphi 0, %s29
    %s21 = sphi 0, %s18
    %s22 = sphi 0, %s19
    %s23 = sphi 0, %s20
    %s24 = sphi 0, %s21
    %s25 = sphi 0, %s22
    %s26 = sphi 0, %s23
    %s44 = sphi 0, %s46
    %s47 = sphi 0, %s44
    %s48 = sphi 0, %s47
    %s64 = sphi 0, %s48
    %s70 = sphi 0, %s72
    %s73 = sphi 0, %s70
    %s74 = sphi 0, %s73
    %s90 = sphi 0, %s74
    %s98 = sphi 0, %s100
    %s101 = sphi 0, %s98
    %s102 = sphi 0, %s101
    %s118 = sphi 0, %s102
    %s124 = sphi 0, %s126
    %s127 = sphi 0, %s124
    %s128 = sphi 0, %s127
    %s144 = sphi 0, %s128
    %s150 = sphi 0, %s152
    %s153 = sphi 0, %s150
    %s154 = sphi 0, %s153
    %s170 = sphi 0, %s154
  $region4: #{bottleneck_in_forward.8} parent=0 // loop_header_branch
    %14 = sbr.rel (%p12) target = $region8
  $region5: #{bottleneck_in_forward.8} parent=0 // loop_body
    %s16 = ssub.s32 %s11, 1
    %s17 = ssub.s32 %s11, 2
    %s27 = sadd.s32 1, %s20
    %p28 = scmp.ge.s32.totalorder %s27, 1
    %s29 = scalar_select %p28, 0, %s27
    %s30 = sadd.s32 1, %s19
    %s31 = scalar_select %p28, %s30, %s19
    %p32 = scmp.ge.s32.totalorder %s31, 1
    %s33 = scalar_select %p32, 0, %s31
    %s34 = sadd.s32 1, %s18
    %s35 = scalar_select %p32, %s34, %s18
    %p36 = scmp.ge.s32.totalorder %s35, 2
    %s37 = scalar_select %p36, 0, %s35
    %s38 = ssub.s32 %s18, %s37
    %s39 = ssub.s32 %s19, %s33
    %s40 = sor.u32 %s38, %s39
    %s41 = ssub.s32 %s20, %s29
    %s42 = sor.u32 %s40, %s41
    %p43 = scmp.eq.s32.totalorder %s42, 0
    %s45 = sadd.s32 %s44, 1
    %s46 = scalar_select %p43, %s44, %s45
    %p49 = pneg %p43
    %p50 = scmp.eq.s32.totalorder %s11, 1
    %p51 = por %p49, %p50
    %p52 = scmp.ne.s32.totalorder %s44, %s47
    %p53 = scmp.eq.s32.totalorder %s11, 0
    %p54 = por %p52, %p53
    %p55 = scmp.ne.s32.totalorder %s44, %s47
    %p56 = scmp.eq.s32.totalorder %s16, 1
    %p57 = por %p55, %p56
    %p58 = scmp.ne.s32.totalorder %s47, %s48
    %p59 = scmp.eq.s32.totalorder %s16, 0
    %p60 = por %p58, %p59
    %p61 = scmp.ne.s32.totalorder %s47, %s48
    %p62 = scmp.eq.s32.totalorder %s17, 1
    %p63 = por %p61, %p62
    %p65 = scmp.ne.s32.totalorder %s48, %s64
    %p66 = scmp.eq.s32.totalorder %s17, 0
    %p67 = por %p65, %p66
    %s68 = ssub.s32 %s20, %s29
    %p69 = scmp.eq.s32.totalorder %s68, 0
    %s71 = sadd.s32 %s70, 1
    %s72 = scalar_select %p69, %s70, %s71
    %p75 = pneg %p69
    %p76 = scmp.eq.s32.totalorder %s11, 1
    %p77 = por %p75, %p76
    %p78 = scmp.ne.s32.totalorder %s70, %s73
    %p79 = scmp.eq.s32.totalorder %s11, 0
    %p80 = por %p78, %p79
    %p81 = scmp.ne.s32.totalorder %s70, %s73
    %p82 = scmp.eq.s32.totalorder %s16, 1
    %p83 = por %p81, %p82
    %p84 = scmp.ne.s32.totalorder %s73, %s74
    %p85 = scmp.eq.s32.totalorder %s16, 0
    %p86 = por %p84, %p85
    %p87 = scmp.ne.s32.totalorder %s73, %s74
    %p88 = scmp.eq.s32.totalorder %s17, 1
    %p89 = por %p87, %p88
    %p91 = scmp.ne.s32.totalorder %s74, %s90
    %p92 = scmp.eq.s32.totalorder %s17, 0
    %p93 = por %p91, %p92
    %s94 = ssub.s32 %s18, %s37
    %s95 = ssub.s32 %s19, %s33
    %s96 = sor.u32 %s94, %s95
    %p97 = scmp.eq.s32.totalorder %s96, 0
    %s99 = sadd.s32 %s98, 1
    %s100 = scalar_select %p97, %s98, %s99
    %p103 = pneg %p97
    %p104 = scmp.eq.s32.totalorder %s11, 1
    %p105 = por %p103, %p104
    %p106 = scmp.ne.s32.totalorder %s98, %s101
    %p107 = scmp.eq.s32.totalorder %s11, 0
    %p108 = por %p106, %p107
    %p109 = scmp.ne.s32.totalorder %s98, %s101
    %p110 = scmp.eq.s32.totalorder %s16, 1
    %p111 = por %p109, %p110
    %p112 = scmp.ne.s32.totalorder %s101, %s102
    %p113 = scmp.eq.s32.totalorder %s16, 0
    %p114 = por %p112, %p113
    %p115 = scmp.ne.s32.totalorder %s101, %s102
    %p116 = scmp.eq.s32.totalorder %s17, 1
    %p117 = por %p115, %p116
    %p119 = scmp.ne.s32.totalorder %s102, %s118
    %p120 = scmp.eq.s32.totalorder %s17, 0
    %p121 = por %p119, %p120
    %s122 = ssub.s32 %s18, %s37
    %p123 = scmp.eq.s32.totalorder %s122, 0
    %s125 = sadd.s32 %s124, 1
    %s126 = scalar_select %p123, %s124, %s125
    %p129 = pneg %p123
    %p130 = scmp.eq.s32.totalorder %s11, 1
    %p131 = por %p129, %p130
    %p132 = scmp.ne.s32.totalorder %s124, %s127
    %p133 = scmp.eq.s32.totalorder %s11, 0
    %p134 = por %p132, %p133
    %p135 = scmp.ne.s32.totalorder %s124, %s127
    %p136 = scmp.eq.s32.totalorder %s16, 1
    %p137 = por %p135, %p136
    %p138 = scmp.ne.s32.totalorder %s127, %s128
    %p139 = scmp.eq.s32.totalorder %s16, 0
    %p140 = por %p138, %p139
    %p141 = scmp.ne.s32.totalorder %s127, %s128
    %p142 = scmp.eq.s32.totalorder %s17, 1
    %p143 = por %p141, %p142
    %p145 = scmp.ne.s32.totalorder %s128, %s144
    %p146 = scmp.eq.s32.totalorder %s17, 0
    %p147 = por %p145, %p146
    %s148 = ssub.s32 %s18, %s37
    %p149 = scmp.eq.s32.totalorder %s148, 0
    %s151 = sadd.s32 %s150, 1
    %s152 = scalar_select %p149, %s150, %s151
    %p155 = pneg %p149
    %p156 = scmp.eq.s32.totalorder %s11, 1
    %p157 = por %p155, %p156
    %p158 = scmp.ne.s32.totalorder %s150, %s153
    %p159 = scmp.eq.s32.totalorder %s11, 0
    %p160 = por %p158, %p159
    %p161 = scmp.ne.s32.totalorder %s150, %s153
    %p162 = scmp.eq.s32.totalorder %s16, 1
    %p163 = por %p161, %p162
    %p164 = scmp.ne.s32.totalorder %s153, %s154
    %p165 = scmp.eq.s32.totalorder %s16, 0
    %p166 = por %p164, %p165
    %p167 = scmp.ne.s32.totalorder %s153, %s154
    %p168 = scmp.eq.s32.totalorder %s17, 1
    %p169 = por %p167, %p168
    %p171 = scmp.ne.s32.totalorder %s154, %s170
    %p172 = scmp.eq.s32.totalorder %s17, 0
    %p173 = por %p171, %p172
    %p174 = scmp.le.s32.totalorder 1, %s11
    %p175 = scmp.lt.s32.totalorder %s11, 3
    %p176 = pnand %p174, %p175
    %p177 = pneg %p176
    // Predicated region
    $region9: #{bottleneck_in_forward.8} parent=5 // pred_check
      _
    $region10: #{bottleneck_in_forward.8} parent=5 // pred_check_branch
      %179 = sbr.rel (%p176) target = $region12
    $region11: #{bottleneck_in_forward.8} parent=5 // pred_region
      %s180 = ssub.s32 %s11, 1
      // Predicated region
      $region13: #{bottleneck_in_forward.8} parent=11 // pred_check
        %p181 = pneg %p86
      $region14: #{bottleneck_in_forward.8} parent=11 // pred_check_branch
        %183 = sbr.rel (%p181) target = $region16
      $region15: #{bottleneck_in_forward.8} parent=11 // pred_region
        %p184 = scmp.lt.s32.totalorder %s23, 0
        %s185 = scalar_select %p184, %s23, 0
        %s186 = smul.addr %s185, 4
        %s187 = scalar_lea.vmem %s1, %s186
      $region16: #{bottleneck_in_forward.8} parent=11 // pred_fallthru
        _
    $region12: #{bottleneck_in_forward.8} parent=5 // pred_fallthru
      _
    %p188 = scmp.lt.s32.totalorder %s11, 2
    // Predicated region
    $region17: #{bottleneck_in_forward.8} parent=5 // pred_check
      %p189 = pneg %p188
    $region18: #{bottleneck_in_forward.8} parent=5 // pred_check_branch
      %191 = sbr.rel (%p189) target = $region20
    $region19: #{bottleneck_in_forward.8} parent=5 // pred_region
      // Predicated region
      $region21: #{bottleneck_in_forward.8} parent=19 // pred_check
        %p192 = pneg %p54
      $region22: #{bottleneck_in_forward.8} parent=19 // pred_check_branch
        %194 = sbr.rel (%p192) target = $region24
      $region23: #{bottleneck_in_forward.8} parent=19 // pred_region
        %s195 = smul.u32 2, %s19
        %p196 = scmp.lt.s32.totalorder %s18, 1
        %s197 = scalar_select %p196, %s18, 1
        %p198 = scmp.lt.s32.totalorder %s195, 1
        %s199 = scalar_select %p198, %s195, 1
        %p200 = scmp.lt.s32.totalorder %s20, 0
        %s201 = scalar_select %p200, %s20, 0
        %s202 = sadd.s32 %s201, %s199
        %s203 = smul.addr %s197, 2
        %s204 = sadd.s32 %s202, %s203
        %s205 = smul.addr %s204, 4
        %s206 = scalar_lea.vmem %s0, %s205
        %s207 = smul.u32 2, %s19
      $region24: #{bottleneck_in_forward.8} parent=19 // pred_fallthru
        _
    $region20: #{bottleneck_in_forward.8} parent=5 // pred_fallthru
      _
    %p208 = scmp.le.s32.totalorder 1, %s11
    %p209 = scmp.lt.s32.totalorder %s11, 3
    %p210 = pnand %p208, %p209
    %p211 = pneg %p210
    // Predicated region
    $region25: #{bottleneck_in_forward.8} parent=5 // pred_check
      _
    $region26: #{bottleneck_in_forward.8} parent=5 // pred_check_branch
      %213 = sbr.rel (%p210) target = $region28
    $region27: #{bottleneck_in_forward.8} parent=5 // pred_region
      %s214 = ssub.s32 %s11, 1
      %s215 = smul.u32 2, %s22
      %p216 = scmp.lt.s32.totalorder %s21, 1
      %s217 = scalar_select %p216, %s21, 1
      %p218 = scmp.lt.s32.totalorder %s215, 1
      %s219 = scalar_select %p218, %s215, 1
      %p220 = scmp.lt.s32.totalorder %s23, 0
      %s221 = scalar_select %p220, %s23, 0
      %s222 = sadd.s32 %s221, %s219
      %s223 = smul.addr %s217, 2
      %s224 = sadd.s32 %s222, %s223
      %s225 = smul.addr %s224, 4
      %s226 = scalar_lea.vmem %s0, %s225
      %p227 = pneg %p60
      %p228 = pneg %p57
      %p229 = scmp.lt.s32.totalorder %s23, 0
      %s230 = scalar_select %p229, %s23, 0
      %s231 = smul.addr %s230, 4
      %s232 = scalar_lea.vmem %s1, %s231
      %p233 = pneg %p86
      %p234 = pneg %p83
      %p235 = pneg %p114
      %p236 = pneg %p111
      %s237 = smul.u32 2, %s22
      %p238 = scmp.lt.s32.totalorder %s21, 1
      %s239 = scalar_select %p238, %s21, 1
      %p240 = scmp.lt.s32.totalorder %s237, 1
      %s241 = scalar_select %p240, %s237, 1
      %s242 = smul.addr %s239, 2
      %s243 = sadd.s32 %s241, %s242
      %s244 = smul.addr %s243, 4
      %s245 = scalar_lea.vmem %s2, %s244
      %p246 = pneg %p140
      %p247 = pneg %p137
      %p248 = scmp.lt.s32.totalorder %s21, 1
      %s249 = scalar_select %p248, %s21, 1
      %s250 = scalar_lea.vmem %s3, %s249
      %p251 = pneg %p166
      %p252 = pneg %p163
      %p253 = scmp.lt.s32.totalorder %s21, 1
      %s254 = scalar_select %p253, %s21, 1
      %s255 = scalar_lea.vmem %s4, %s254
      %s256 = smul.u32 2, %s22
      %p257 = scmp.lt.s32.totalorder %s21, 1
      %s258 = scalar_select %p257, %s21, 1
      %p259 = scmp.lt.s32.totalorder %s256, 1
      %s260 = scalar_select %p259, %s256, 1
      %p261 = scmp.lt.s32.totalorder %s23, 0
      %s262 = scalar_select %p261, %s23, 0
      %s263 = sadd.s32 %s262, %s260
      %s264 = smul.addr %s258, 2
      %s265 = sadd.s32 %s263, %s264
      %s266 = smul.addr %s265, 4
      %s267 = scalar_lea.vmem %s0, %s266
      %s268 = smul.u32 2, %s22
      %p269 = scmp.lt.s32.totalorder %s23, 0
      %s270 = scalar_select %p269, %s23, 0
      %s271 = smul.addr %s270, 4
      %s272 = scalar_lea.vmem %s1, %s271
      %s273 = smul.u32 2, %s22
      %p274 = scmp.lt.s32.totalorder %s21, 1
      %s275 = scalar_select %p274, %s21, 1
      %p276 = scmp.lt.s32.totalorder %s273, 1
      %s277 = scalar_select %p276, %s273, 1
      %s278 = smul.addr %s275, 2
      %s279 = sadd.s32 %s277, %s278
      %s280 = smul.addr %s279, 4
      %s281 = scalar_lea.vmem %s2, %s280
      %s282 = smul.u32 2, %s22
      %p283 = scmp.lt.s32.totalorder %s21, 1
      %s284 = scalar_select %p283, %s21, 1
      %s285 = scalar_lea.vmem %s3, %s284
      %p286 = scmp.lt.s32.totalorder %s21, 1
      %s287 = scalar_select %p286, %s21, 1
      %s288 = scalar_lea.vmem %s4, %s287
      %p290 = scmp.eq.s32.totalorder %s23, 0
      // Predicated region
      $region29: #{bottleneck_in_forward.8} parent=27 // pred_check
        %p291 = pneg %p290
      $region30: #{bottleneck_in_forward.8} parent=27 // pred_check_branch
        %293 = sbr.rel (%p291) target = $region32
      $region31: #{bottleneck_in_forward.8} parent=27 // pred_region
        %vm294 = vcmask 130048
        %295 = vst.msk [vmem:[#allocation2] sm:$0xff] %vm294, 0.0
        %296 = vst.msk [vmem:[#allocation2 + $0x8] sm:$0xff] %vm294, 0.0
      $region32: #{bottleneck_in_forward.8} parent=27 // pred_fallthru
        _
      %p297 = scmp.eq.s32.totalorder %s22, 0
      %p298 = pnand %p297, %p290
      %p299 = pneg %p298
      // Predicated region
      $region33: #{bottleneck_in_forward.8} parent=27 // pred_check
        _
      $region34: #{bottleneck_in_forward.8} parent=27 // pred_check_branch
        %301 = sbr.rel (%p298) target = $region36
      $region35: #{bottleneck_in_forward.8} parent=27 // pred_region
        %vm302 = vcmask 122880
        %303 = vst.msk [vmem:[%s285] sm:$0x1] %vm302, 0.0
        %304 = vst.msk [vmem:[%s288] sm:$0x1] %vm302, 0.0
      $region36: #{bottleneck_in_forward.8} parent=27 // pred_fallthru
        _
      %v305 = vld [vmem:[#allocation2] sm:$0xff]
      %v306 = vld [vmem:[#allocation2 + $0x8] sm:$0xff]
      %v307 = vld [vmem:[%s267] sm:$0xf]
      %v308 = vld [vmem:[%s267 + $0x4] sm:$0xf]
      %v309 = vld [vmem:[%s272] sm:$0xf]
      %v312 = vunpack.c.l.b16 %v307
      %v313 = vunpack.c.l.b16 %v308
      %v314 = vpack.c.b16 %v313, %v312
      %vm315 = vcmask 64512
      %v317 = vsel %vm315, %v314, 0
      %vm319 = vcmask 1043456
      %v321 = vsel %vm319, %v309, 0
      %323 = vmatprep.subr.bf16.mxu0 0
      %324 = vmatpush1.bf16.msra.mxu0 %v321
      %325 = vmatprep.subr.bf16.mxu0 0
      %326 = vmatpush1.bf16.msra.mxu0 0
      %327 = vmatprep.subr.bf16.mxu0 0
      %328 = vmatpush1.bf16.msra.mxu0 0
      %329 = vmatprep.subr.bf16.mxu0 0
      %330 = vmatpush1.bf16.msra.mxu0 0
      %331 = vmatprep.subr.bf16.mxu0 0
      %332 = vmatpush1.bf16.msra.mxu0 0
      %333 = vmatprep.subr.bf16.mxu0 0
      %334 = vmatpush1.bf16.msra.mxu0 0
      %335 = vmatprep.subr.bf16.mxu0 0
      %336 = vmatpush1.bf16.msra.mxu0 0
      %337 = vmatprep.subr.bf16.mxu0 0
      %338 = vmatpush1.bf16.msra.mxu0 0
      %339 = vmatprep.subr.bf16.mxu0 0
      %340 = vmatpush1.bf16.msra.mxu0 0
      %341 = vmatprep.subr.bf16.mxu0 0
      %342 = vmatpush1.bf16.msra.mxu0 0
      %343 = vmatprep.subr.bf16.mxu0 0
      %344 = vmatpush1.bf16.msra.mxu0 0
      %345 = vmatprep.subr.bf16.mxu0 0
      %346 = vmatpush1.bf16.msra.mxu0 0
      %347 = vmatprep.subr.bf16.mxu0 0
      %348 = vmatpush1.bf16.msra.mxu0 0
      %349 = vmatprep.subr.bf16.mxu0 0
      %350 = vmatpush1.bf16.msra.mxu0 0
      %351 = vmatprep.subr.bf16.mxu0 0
      %352 = vmatpush1.bf16.msra.mxu0 0
      %353 = vmatprep.subr.bf16.mxu0 0
      %354 = vmatpush1.bf16.msra.mxu0 0
      %355 = vmatprep.mubr.bf16.mxu0 0
      %356 = vmatmul.mubr.bf16.gmra.mrb[0].mxu0 %v317
      %v357 = vpop.f32.mrb[0].mxu0
      %v358 = vadd.f32 0.0, %v357
      %v359 = vpop.f32.mrb[0].mxu0
      %v360 = vpop.f32.mrb[0].mxu0
      %v361 = vadd.f32 0.0, %v360
      %v362 = vpop.f32.mrb[0].mxu0
      %363 = vdwg.mxu0
      %v364 = vadd.f32 %v305, %v358
      %v365 = vadd.f32 %v306, %v361
      %vm366 = vcmask 130048
      %367 = vst.msk [vmem:[#allocation2] sm:$0xff] %vm366, %v364
      %368 = vst.msk [vmem:[#allocation2 + $0x8] sm:$0xff] %vm366, %v365
      // Predicated region
      $region37: #{bottleneck_in_forward.8} parent=27 // pred_check
        %p369 = pneg %p290
      $region38: #{bottleneck_in_forward.8} parent=27 // pred_check_branch
        %371 = sbr.rel (%p369) target = $region40
      $region39: #{bottleneck_in_forward.8} parent=27 // pred_region
        %v372 = vld [vmem:[#allocation2] sm:$0xff]
        %v373 = vld [vmem:[#allocation2 + $0x8] sm:$0xff]
        %v374 = vpack.c.bf16 %v373, %v372
        %v376 = vunpack.c.l.b16 %v374
        %v377 = vunpack.c.h.b16 %v374
        %v378 = vpack.c.b16 %v376, %v376
        %v379 = vpack.c.b16 %v377, %v377
        %vm382 = vcmask 125952
        %383 = vst.msk [vmem:[%s281] sm:$0xf] %vm382, %v378
        %384 = vst.msk [vmem:[%s281 + $0x4] sm:$0xf] %vm382, %v379
        %v385 = vld [vmem:[%s285] sm:$0x1]
        %v386 = vsel %vm366, %v372, 0.0
        %v387 = vsel %vm366, %v373, 0.0
        %v388 = vadd.f32 %v386, %v387
        %v389 = vrot.slane %v388, 4
        %v390 = vadd.f32 %v388, %v389
        %v391 = vrot.slane %v390, 2
        %v392 = vadd.f32 %v390, %v391
        %v393 = vrot.slane %v392, 1
        %v394 = vadd.f32 %v392, %v393
        %v395 = vadd.f32 %v385, %v394
        %vm396 = vcmask 122880
        %397 = vst.msk [vmem:[%s285] sm:$0x1] %vm396, %v395
        %v398 = vld [vmem:[%s288] sm:$0x1]
        %v399 = vmul.f32 %v372, %v372
        %v400 = vmul.f32 %v373, %v373
        %v401 = vsel %vm366, %v399, 0.0
        %v402 = vsel %vm366, %v400, 0.0
        %v403 = vadd.f32 %v401, %v402
        %v404 = vrot.slane %v403, 4
        %v405 = vadd.f32 %v403, %v404
        %v406 = vrot.slane %v405, 2
        %v407 = vadd.f32 %v405, %v406
        %v408 = vrot.slane %v407, 1
        %v409 = vadd.f32 %v407, %v408
        %v410 = vadd.f32 %v398, %v409
        %411 = vst.msk [vmem:[%s288] sm:$0x1] %vm396, %v410
      $region40: #{bottleneck_in_forward.8} parent=27 // pred_fallthru
        _
      %s412 = smul.u32 2, %s22
      %p413 = scmp.lt.s32.totalorder %s21, 1
      %s414 = scalar_select %p413, %s21, 1
      %p415 = scmp.lt.s32.totalorder %s412, 1
      %s416 = scalar_select %p415, %s412, 1
      %s417 = smul.addr %s414, 2
      %s418 = sadd.s32 %s416, %s417
      %s419 = smul.addr %s418, 4
      %s420 = scalar_lea.vmem %s2, %s419
      %p421 = scmp.lt.s32.totalorder %s21, 1
      %s422 = scalar_select %p421, %s21, 1
      %s423 = scalar_lea.vmem %s3, %s422
      %p424 = scmp.lt.s32.totalorder %s21, 1
      %s425 = scalar_select %p424, %s21, 1
      %s426 = scalar_lea.vmem %s4, %s425
      // Predicated region
      $region41: #{bottleneck_in_forward.8} parent=27 // pred_check
        %p427 = pneg %p111
      $region42: #{bottleneck_in_forward.8} parent=27 // pred_check_branch
        %429 = sbr.rel (%p427) target = $region44
      $region43: #{bottleneck_in_forward.8} parent=27 // pred_region
        %s430 = smul.u32 2, %s22
      $region44: #{bottleneck_in_forward.8} parent=27 // pred_fallthru
        _
      // Predicated region
      $region45: #{bottleneck_in_forward.8} parent=27 // pred_check
        %p431 = pneg %p137
      $region46: #{bottleneck_in_forward.8} parent=27 // pred_check_branch
        %433 = sbr.rel (%p431) target = $region48
      $region47: #{bottleneck_in_forward.8} parent=27 // pred_region
        _
      $region48: #{bottleneck_in_forward.8} parent=27 // pred_fallthru
        _
      // Predicated region
      $region49: #{bottleneck_in_forward.8} parent=27 // pred_check
        %p434 = pneg %p163
      $region50: #{bottleneck_in_forward.8} parent=27 // pred_check_branch
        %436 = sbr.rel (%p434) target = $region52
      $region51: #{bottleneck_in_forward.8} parent=27 // pred_region
        _
      $region52: #{bottleneck_in_forward.8} parent=27 // pred_fallthru
        _
    $region28: #{bottleneck_in_forward.8} parent=5 // pred_fallthru
      _
    %p437 = scmp.le.s32.totalorder 2, %s11
    // Predicated region
    $region53: #{bottleneck_in_forward.8} parent=5 // pred_check
      %p438 = pneg %p437
    $region54: #{bottleneck_in_forward.8} parent=5 // pred_check_branch
      %440 = sbr.rel (%p438) target = $region56
    $region55: #{bottleneck_in_forward.8} parent=5 // pred_region
      %s441 = ssub.s32 %s11, 2
      // Predicated region
      $region57: #{bottleneck_in_forward.8} parent=55 // pred_check
        %p442 = pneg %p117
      $region58: #{bottleneck_in_forward.8} parent=55 // pred_check_branch
        %444 = sbr.rel (%p442) target = $region60
      $region59: #{bottleneck_in_forward.8} parent=55 // pred_region
        %s445 = smul.u32 2, %s25
        %p446 = scmp.lt.s32.totalorder %s24, 1
        %s447 = scalar_select %p446, %s24, 1
        %p448 = scmp.lt.s32.totalorder %s445, 1
        %s449 = scalar_select %p448, %s445, 1
        %s450 = smul.addr %s447, 2
        %s451 = sadd.s32 %s449, %s450
        %s452 = smul.addr %s451, 4
        %s453 = scalar_lea.vmem %s2, %s452
      $region60: #{bottleneck_in_forward.8} parent=55 // pred_fallthru
        _
      // Predicated region
      $region61: #{bottleneck_in_forward.8} parent=55 // pred_check
        %p454 = pneg %p143
      $region62: #{bottleneck_in_forward.8} parent=55 // pred_check_branch
        %456 = sbr.rel (%p454) target = $region64
      $region63: #{bottleneck_in_forward.8} parent=55 // pred_region
        %p457 = scmp.lt.s32.totalorder %s24, 1
        %s458 = scalar_select %p457, %s24, 1
        %s459 = scalar_lea.vmem %s3, %s458
      $region64: #{bottleneck_in_forward.8} parent=55 // pred_fallthru
        _
      // Predicated region
      $region65: #{bottleneck_in_forward.8} parent=55 // pred_check
        %p460 = pneg %p169
      $region66: #{bottleneck_in_forward.8} parent=55 // pred_check_branch
        %462 = sbr.rel (%p460) target = $region68
      $region67: #{bottleneck_in_forward.8} parent=55 // pred_region
        %p463 = scmp.lt.s32.totalorder %s24, 1
        %s464 = scalar_select %p463, %s24, 1
        %s465 = scalar_lea.vmem %s4, %s464
      $region68: #{bottleneck_in_forward.8} parent=55 // pred_fallthru
        _
    $region56: #{bottleneck_in_forward.8} parent=5 // pred_fallthru
      _
  $region6: #{bottleneck_in_forward.8} parent=0 // loop_footer
    %s15 = sadd.s32 1, %s11
  $region7: #{bottleneck_in_forward.8} parent=0 // loop_footer_branch
    %10 = sbr.rel target = $region3
  $region8: #{bottleneck_in_forward.8} parent=0 // loop_exit
    _

// kernel: bottleneck_in_forward.5
$region0: #{bottleneck_in_forward.5}
  #allocation0 [shape = 'u32[]', space=smem, size = 0x4, offset = 0x4, fixed_abs, tag = 'smem constant byte address 0x4 - core index']
  #allocation1 [shape = 'u32[144,128]{1,0:T(1,128)}', space=vmem, size = 0x12000, scoped, tag = 'internal scratch']
  #allocation2 [shape = 'f32[64,4]{1,0:T(8,128)}', space=vmem, size = 0x8000, scoped, tag = 'scratch operand']
  %s0 = inlined_call_operand.vmem [shape: bf16[2,64,8], index: 0, kind: input, shape index: {}]
  %s1 = inlined_call_operand.vmem [shape: bf16[8,4], index: 1, kind: input, shape index: {}]
  %s2 = inlined_call_operand.vmem [shape: bf16[2,64,4], index: 2, kind: output, shape index: {}]
  %s3 = sld [smem:[#allocation0]]
  $region49: #{bottleneck_in_forward.5} parent=0
    _
  %s5 = ssub.s32 1, %s3
  %s6 = scalar_select 0, %s5, %s3
  loop: start=0, step=1, limit=4
  $region2: #{bottleneck_in_forward.5} parent=0 // loop_pre_header
    _
  $region3: #{bottleneck_in_forward.5} parent=0 // loop_header
    %s8 = sphi 0, %s12
    %p9 = scmp.ge.s32.totalorder %s8, 4
    %s15 = sphi 0, %s27
    %s16 = sphi 0, %s23
    %s17 = sphi 0, %s15
    %s18 = sphi 0, %s16
    %s19 = sphi 0, %s17
    %s20 = sphi 0, %s18
    %s32 = sphi 0, %s34
    %s35 = sphi 0, %s32
    %s36 = sphi 0, %s35
    %s52 = sphi 0, %s36
    %s58 = sphi 0, %s60
    %s61 = sphi 0, %s58
    %s62 = sphi 0, %s61
    %s78 = sphi 0, %s62
    %s84 = sphi 0, %s86
    %s87 = sphi 0, %s84
    %s88 = sphi 0, %s87
    %s104 = sphi 0, %s88
  $region4: #{bottleneck_in_forward.5} parent=0 // loop_header_branch
    %11 = sbr.rel (%p9) target = $region8
  $region5: #{bottleneck_in_forward.5} parent=0 // loop_body
    %s13 = ssub.s32 %s8, 1
    %s14 = ssub.s32 %s8, 2
    %s21 = sadd.s32 1, %s16
    %p22 = scmp.ge.s32.totalorder %s21, 1
    %s23 = scalar_select %p22, 0, %s21
    %s24 = sadd.s32 1, %s15
    %s25 = scalar_select %p22, %s24, %s15
    %p26 = scmp.ge.s32.totalorder %s25, 2
    %s27 = scalar_select %p26, 0, %s25
    %s28 = ssub.s32 %s15, %s27
    %s29 = ssub.s32 %s16, %s23
    %s30 = sor.u32 %s28, %s29
    %p31 = scmp.eq.s32.totalorder %s30, 0
    %s33 = sadd.s32 %s32, 1
    %s34 = scalar_select %p31, %s32, %s33
    %p37 = pneg %p31
    %p38 = scmp.eq.s32.totalorder %s8, 1
    %p39 = por %p37, %p38
    %p40 = scmp.ne.s32.totalorder %s32, %s35
    %p41 = scmp.eq.s32.totalorder %s8, 0
    %p42 = por %p40, %p41
    %p43 = scmp.ne.s32.totalorder %s32, %s35
    %p44 = scmp.eq.s32.totalorder %s13, 1
    %p45 = por %p43, %p44
    %p46 = scmp.ne.s32.totalorder %s35, %s36
    %p47 = scmp.eq.s32.totalorder %s13, 0
    %p48 = por %p46, %p47
    %p49 = scmp.ne.s32.totalorder %s35, %s36
    %p50 = scmp.eq.s32.totalorder %s14, 1
    %p51 = por %p49, %p50
    %p53 = scmp.ne.s32.totalorder %s36, %s52
    %p54 = scmp.eq.s32.totalorder %s14, 0
    %p55 = por %p53, %p54
    %s56 = ssub.s32 %s16, %s23
    %p57 = scmp.eq.s32.totalorder %s56, 0
    %s59 = sadd.s32 %s58, 1
    %s60 = scalar_select %p57, %s58, %s59
    %p63 = pneg %p57
    %p64 = scmp.eq.s32.totalorder %s8, 1
    %p65 = por %p63, %p64
    %p66 = scmp.ne.s32.totalorder %s58, %s61
    %p67 = scmp.eq.s32.totalorder %s8, 0
    %p68 = por %p66, %p67
    %p69 = scmp.ne.s32.totalorder %s58, %s61
    %p70 = scmp.eq.s32.totalorder %s13, 1
    %p71 = por %p69, %p70
    %p72 = scmp.ne.s32.totalorder %s61, %s62
    %p73 = scmp.eq.s32.totalorder %s13, 0
    %p74 = por %p72, %p73
    %p75 = scmp.ne.s32.totalorder %s61, %s62
    %p76 = scmp.eq.s32.totalorder %s14, 1
    %p77 = por %p75, %p76
    %p79 = scmp.ne.s32.totalorder %s62, %s78
    %p80 = scmp.eq.s32.totalorder %s14, 0
    %p81 = por %p79, %p80
    %s82 = ssub.s32 %s15, %s27
    %p83 = scmp.eq.s32.totalorder %s82, 0
    %s85 = sadd.s32 %s84, 1
    %s86 = scalar_select %p83, %s84, %s85
    %p89 = pneg %p83
    %p90 = scmp.eq.s32.totalorder %s8, 1
    %p91 = por %p89, %p90
    %p92 = scmp.ne.s32.totalorder %s84, %s87
    %p93 = scmp.eq.s32.totalorder %s8, 0
    %p94 = por %p92, %p93
    %p95 = scmp.ne.s32.totalorder %s84, %s87
    %p96 = scmp.eq.s32.totalorder %s13, 1
    %p97 = por %p95, %p96
    %p98 = scmp.ne.s32.totalorder %s87, %s88
    %p99 = scmp.eq.s32.totalorder %s13, 0
    %p100 = por %p98, %p99
    %p101 = scmp.ne.s32.totalorder %s87, %s88
    %p102 = scmp.eq.s32.totalorder %s14, 1
    %p103 = por %p101, %p102
    %p105 = scmp.ne.s32.totalorder %s88, %s104
    %p106 = scmp.eq.s32.totalorder %s14, 0
    %p107 = por %p105, %p106
    %p108 = scmp.le.s32.totalorder 1, %s8
    %p109 = scmp.lt.s32.totalorder %s8, 3
    %p110 = pnand %p108, %p109
    %p111 = pneg %p110
    // Predicated region
    $region9: #{bottleneck_in_forward.5} parent=5 // pred_check
      _
    $region10: #{bottleneck_in_forward.5} parent=5 // pred_check_branch
      %113 = sbr.rel (%p110) target = $region12
    $region11: #{bottleneck_in_forward.5} parent=5 // pred_region
      %s114 = ssub.s32 %s8, 1
      // Predicated region
      $region13: #{bottleneck_in_forward.5} parent=11 // pred_check
        %p115 = pneg %p74
      $region14: #{bottleneck_in_forward.5} parent=11 // pred_check_branch
        %117 = sbr.rel (%p115) target = $region16
      $region15: #{bottleneck_in_forward.5} parent=11 // pred_region
        %p118 = scmp.lt.s32.totalorder %s18, 0
        %s119 = scalar_select %p118, %s18, 0
        %s120 = smul.addr %s119, 4
        %s121 = scalar_lea.vmem %s1, %s120
      $region16: #{bottleneck_in_forward.5} parent=11 // pred_fallthru
        _
    $region12: #{bottleneck_in_forward.5} parent=5 // pred_fallthru
      _
    %p122 = scmp.lt.s32.totalorder %s8, 2
    // Predicated region
    $region17: #{bottleneck_in_forward.5} parent=5 // pred_check
      %p123 = pneg %p122
    $region18: #{bottleneck_in_forward.5} parent=5 // pred_check_branch
      %125 = sbr.rel (%p123) target = $region20
    $region19: #{bottleneck_in_forward.5} parent=5 // pred_region
      // Predicated region
      $region21: #{bottleneck_in_forward.5} parent=19 // pred_check
        %p126 = pneg %p42
      $region22: #{bottleneck_in_forward.5} parent=19 // pred_check_branch
        %128 = sbr.rel (%p126) target = $region24
      $region23: #{bottleneck_in_forward.5} parent=19 // pred_region
        %p129 = scmp.lt.s32.totalorder %s15, 1
        %s130 = scalar_select %p129, %s15, 1
        %p131 = scmp.lt.s32.totalorder %s16, 0
        %s132 = scalar_select %p131, %s16, 0
        %s133 = smul.addr %s130, 8
        %s134 = sadd.s32 %s132, %s133
        %s135 = smul.addr %s134, 4
        %s136 = scalar_lea.vmem %s0, %s135
      $region24: #{bottleneck_in_forward.5} parent=19 // pred_fallthru
        _
    $region20: #{bottleneck_in_forward.5} parent=5 // pred_fallthru
      _
    %p137 = scmp.le.s32.totalorder 1, %s8
    %p138 = scmp.lt.s32.totalorder %s8, 3
    %p139 = pnand %p137, %p138
    %p140 = pneg %p139
    // Predicated region
    $region25: #{bottleneck_in_forward.5} parent=5 // pred_check
      _
    $region26: #{bottleneck_in_forward.5} parent=5 // pred_check_branch
      %142 = sbr.rel (%p139) target = $region28
    $region27: #{bottleneck_in_forward.5} parent=5 // pred_region
      %s143 = ssub.s32 %s8, 1
      %p144 = scmp.lt.s32.totalorder %s17, 1
      %s145 = scalar_select %p144, %s17, 1
      %p146 = scmp.lt.s32.totalorder %s18, 0
      %s147 = scalar_select %p146, %s18, 0
      %s148 = smul.addr %s145, 8
      %s149 = sadd.s32 %s147, %s148
      %s150 = smul.addr %s149, 4
      %s151 = scalar_lea.vmem %s0, %s150
      %p152 = pneg %p48
      %p153 = pneg %p45
      %p154 = scmp.lt.s32.totalorder %s18, 0
      %s155 = scalar_select %p154, %s18, 0
      %s156 = smul.addr %s155, 4
      %s157 = scalar_lea.vmem %s1, %s156
      %p158 = pneg %p74
      %p159 = pneg %p71
      %p160 = pneg %p100
      %p161 = pneg %p97
      %p162 = scmp.lt.s32.totalorder %s17, 1
      %s163 = scalar_select %p162, %s17, 1
      %s164 = smul.addr %s163, 8
      %s165 = smul.addr %s164, 4
      %s166 = scalar_lea.vmem %s2, %s165
      %p167 = scmp.lt.s32.totalorder %s17, 1
      %s168 = scalar_select %p167, %s17, 1
      %p169 = scmp.lt.s32.totalorder %s18, 0
      %s170 = scalar_select %p169, %s18, 0
      %s171 = smul.addr %s168, 8
      %s172 = sadd.s32 %s170, %s171
      %s173 = smul.addr %s172, 4
      %s174 = scalar_lea.vmem %s0, %s173
      %p175 = scmp.lt.s32.totalorder %s18, 0
      %s176 = scalar_select %p175, %s18, 0
      %s177 = smul.addr %s176, 4
      %s178 = scalar_lea.vmem %s1, %s177
      %p179 = scmp.lt.s32.totalorder %s17, 1
      %s180 = scalar_select %p179, %s17, 1
      %s181 = smul.addr %s180, 8
      %s182 = smul.addr %s181, 4
      %s183 = scalar_lea.vmem %s2, %s182
      %p185 = scmp.eq.s32.totalorder %s18, 0
      // Predicated region
      $region29: #{bottleneck_in_forward.5} parent=27 // pred_check
        %p186 = pneg %p185
      $region30: #{bottleneck_in_forward.5} parent=27 // pred_check_branch
        %188 = sbr.rel (%p186) target = $region32
      $region31: #{bottleneck_in_forward.5} parent=27 // pred_region
        %vm189 = vcmask 31744
        %190 = vst.msk [vmem:[#allocation2] sm:$0xff] %vm189, 0.0
        %191 = vst.msk [vmem:[#allocation2 + $0x8] sm:$0xff] %vm189, 0.0
        %192 = vst.msk [vmem:[#allocation2 + $0x10] sm:$0xff] %vm189, 0.0
        %193 = vst.msk [vmem:[#allocation2 + $0x18] sm:$0xff] %vm189, 0.0
        %194 = vst.msk [vmem:[#allocation2 + $0x20] sm:$0xff] %vm189, 0.0
        %195 = vst.msk [vmem:[#allocation2 + $0x28] sm:$0xff] %vm189, 0.0
        %196 = vst.msk [vmem:[#allocation2 + $0x30] sm:$0xff] %vm189, 0.0
        %197 = vst.msk [vmem:[#allocation2 + $0x38] sm:$0xff] %vm189, 0.0
      $region32: #{bottleneck_in_forward.5} parent=27 // pred_fallthru
        _
      %v198 = vld [vmem:[#allocation2] sm:$0xff]
      %v199 = vld [vmem:[#allocation2 + $0x8] sm:$0xff]
      %v200 = vld [vmem:[#allocation2 + $0x10] sm:$0xff]
      %v201 = vld [vmem:[#allocation2 + $0x18] sm:$0xff]
      %v202 = vld [vmem:[#allocation2 + $0x20] sm:$0xff]
      %v203 = vld [vmem:[#allocation2 + $0x28] sm:$0xff]
      %v204 = vld [vmem:[#allocation2 + $0x30] sm:$0xff]
      %v205 = vld [vmem:[#allocation2 + $0x38] sm:$0xff]
      %v206 = vld [vmem:[%s174] sm:$0xf]
      %v207 = vld [vmem:[%s174 + $0x4] sm:$0xf]
      %v208 = vld [vmem:[%s174 + $0x8] sm:$0xf]
      %v209 = vld [vmem:[%s174 + $0xc] sm:$0xf]
      %v210 = vld [vmem:[%s174 + $0x10] sm:$0xf]
      %v211 = vld [vmem:[%s174 + $0x14] sm:$0xf]
      %v212 = vld [vmem:[%s174 + $0x18] sm:$0xf]
      %v213 = vld [vmem:[%s174 + $0x1c] sm:$0xf]
      %v214 = vld [vmem:[%s178] sm:$0xf]
      %v223 = vunpack.c.l.b16 %v206
      %v224 = vunpack.c.l.b16 %v207
      %v225 = vunpack.c.l.b16 %v208
      %v226 = vunpack.c.l.b16 %v209
      %v227 = vunpack.c.l.b16 %v210
      %v228 = vunpack.c.l.b16 %v211
      %v229 = vunpack.c.l.b16 %v212
      %v230 = vunpack.c.l.b16 %v213
      %v231 = vpack.c.b16 %v224, %v223
      %v232 = vpack.c.b16 %v226, %v225
      %v233 = vpack.c.b16 %v228, %v227
      %v234 = vpack.c.b16 %v230, %v229
      %vm235 = vcmask 64512
      %v237 = vsel %vm235, %v231, 0
      %v240 = vsel %vm235, %v232, 0
      %v243 = vsel %vm235, %v233, 0
      %v246 = vsel %vm235, %v234, 0
      %vm248 = vcmask 1043456
      %v250 = vsel %vm248, %v214, 0
      %252 = vmatprep.subr.bf16.mxu0 0
      %253 = vmatpush1.bf16.msra.mxu0 %v250
      %254 = vmatprep.subr.bf16.mxu0 0
      %255 = vmatpush1.bf16.msra.mxu0 0
      %256 = vmatprep.subr.bf16.mxu0 0
      %257 = vmatpush1.bf16.msra.mxu0 0
      %258 = vmatprep.subr.bf16.mxu0 0
      %259 = vmatpush1.bf16.msra.mxu0 0
      %260 = vmatprep.subr.bf16.mxu0 0
      %261 = vmatpush1.bf16.msra.mxu0 0
      %262 = vmatprep.subr.bf16.mxu0 0
      %263 = vmatpush1.bf16.msra.mxu0 0
      %264 = vmatprep.subr.bf16.mxu0 0
      %265 = vmatpush1.bf16.msra.mxu0 0
      %266 = vmatprep.subr.bf16.mxu0 0
      %267 = vmatpush1.bf16.msra.mxu0 0
      %268 = vmatprep.subr.bf16.mxu0 0
      %269 = vmatpush1.bf16.msra.mxu0 0
      %270 = vmatprep.subr.bf16.mxu0 0
      %271 = vmatpush1.bf16.msra.mxu0 0
      %272 = vmatprep.subr.bf16.mxu0 0
      %273 = vmatpush1.bf16.msra.mxu0 0
      %274 = vmatprep.subr.bf16.mxu0 0
      %275 = vmatpush1.bf16.msra.mxu0 0
      %276 = vmatprep.subr.bf16.mxu0 0
      %277 = vmatpush1.bf16.msra.mxu0 0
      %278 = vmatprep.subr.bf16.mxu0 0
      %279 = vmatpush1.bf16.msra.mxu0 0
      %280 = vmatprep.subr.bf16.mxu0 0
      %281 = vmatpush1.bf16.msra.mxu0 0
      %282 = vmatprep.subr.bf16.mxu0 0
      %283 = vmatpush1.bf16.msra.mxu0 0
      %284 = vmatprep.mubr.bf16.mxu0 0
      %285 = vmatmul.mubr.bf16.gmra.mrb[0].mxu0 %v237
      %v286 = vpop.f32.mrb[0].mxu0
      %v287 = vadd.f32 0.0, %v286
      %v288 = vpop.f32.mrb[0].mxu0
      %v289 = vpop.f32.mrb[0].mxu0
      %v290 = vadd.f32 0.0, %v289
      %v291 = vpop.f32.mrb[0].mxu0
      %292 = vmatprep.mubr.bf16.mxu0 0
      %293 = vmatmul.mubr.bf16.gmra.mrb[0].mxu0 %v240
      %v294 = vpop.f32.mrb[0].mxu0
      %v295 = vadd.f32 0.0, %v294
      %v296 = vpop.f32.mrb[0].mxu0
      %v297 = vpop.f32.mrb[0].mxu0
      %v298 = vadd.f32 0.0, %v297
      %v299 = vpop.f32.mrb[0].mxu0
      %300 = vmatprep.mubr.bf16.mxu0 0
      %301 = vmatmul.mubr.bf16.gmra.mrb[0].mxu0 %v243
      %v302 = vpop.f32.mrb[0].mxu0
      %v303 = vadd.f32 0.0, %v302
      %v304 = vpop.f32.mrb[0].mxu0
      %v305 = vpop.f32.mrb[0].mxu0
      %v306 = vadd.f32 0.0, %v305
      %v307 = vpop.f32.mrb[0].mxu0
      %308 = vmatprep.mubr.bf16.mxu0 0
      %309 = vmatmul.mubr.bf16.gmra.mrb[0].mxu0 %v246
      %v310 = vpop.f32.mrb[0].mxu0
      %v311 = vadd.f32 0.0, %v310
      %v312 = vpop.f32.mrb[0].mxu0
      %v313 = vpop.f32.mrb[0].mxu0
      %v314 = vadd.f32 0.0, %v313
      %v315 = vpop.f32.mrb[0].mxu0
      %316 = vdwg.mxu0
      %v317 = vadd.f32 %v198, %v287
      %v318 = vadd.f32 %v199, %v290
      %v319 = vadd.f32 %v200, %v295
      %v320 = vadd.f32 %v201, %v298
      %v321 = vadd.f32 %v202, %v303
      %v322 = vadd.f32 %v203, %v306
      %v323 = vadd.f32 %v204, %v311
      %v324 = vadd.f32 %v205, %v314
      %vm325 = vcmask 31744
      %326 = vst.msk [vmem:[#allocation2] sm:$0xff] %vm325, %v317
      %327 = vst.msk [vmem:[#allocation2 + $0x8] sm:$0xff] %vm325, %v318
      %328 = vst.msk [vmem:[#allocation2 + $0x10] sm:$0xff] %vm325, %v319
      %329 = vst.msk [vmem:[#allocation2 + $0x18] sm:$0xff] %vm325, %v320
      %330 = vst.msk [vmem:[#allocation2 + $0x20] sm:$0xff] %vm325, %v321
      %331 = vst.msk [vmem:[#allocation2 + $0x28] sm:$0xff] %vm325, %v322
      %332 = vst.msk [vmem:[#allocation2 + $0x30] sm:$0xff] %vm325, %v323
      %333 = vst.msk [vmem:[#allocation2 + $0x38] sm:$0xff] %vm325, %v324
      // Predicated region
      $region33: #{bottleneck_in_forward.5} parent=27 // pred_check
        %p334 = pneg %p185
      $region34: #{bottleneck_in_forward.5} parent=27 // pred_check_branch
        %336 = sbr.rel (%p334) target = $region36
      $region35: #{bottleneck_in_forward.5} parent=27 // pred_region
        %v337 = vld [vmem:[#allocation2] sm:$0xff]
        %v338 = vld [vmem:[#allocation2 + $0x8] sm:$0xff]
        %v339 = vld [vmem:[#allocation2 + $0x10] sm:$0xff]
        %v340 = vld [vmem:[#allocation2 + $0x18] sm:$0xff]
        %v341 = vld [vmem:[#allocation2 + $0x20] sm:$0xff]
        %v342 = vld [vmem:[#allocation2 + $0x28] sm:$0xff]
        %v343 = vld [vmem:[#allocation2 + $0x30] sm:$0xff]
        %v344 = vld [vmem:[#allocation2 + $0x38] sm:$0xff]
        %v345 = vsel %vm325, %v337, 0.0
        %v346 = vsel %vm325, %v338, 0.0
        %v347 = vadd.f32 %v345, %v346
        %v348 = vsel %vm325, %v339, 0.0
        %v349 = vadd.f32 %v347, %v348
        %v350 = vsel %vm325, %v340, 0.0
        %v351 = vadd.f32 %v349, %v350
        %v352 = vsel %vm325, %v341, 0.0
        %v353 = vadd.f32 %v351, %v352
        %v354 = vsel %vm325, %v342, 0.0
        %v355 = vadd.f32 %v353, %v354
        %v356 = vsel %vm325, %v343, 0.0
        %v357 = vadd.f32 %v355, %v356
        %v358 = vsel %vm325, %v344, 0.0
        %v359 = vadd.f32 %v357, %v358
        %v360 = vrot.slane %v359, 4
        %v361 = vadd.f32 %v359, %v360
        %v362 = vrot.slane %v361, 2
        %v363 = vadd.f32 %v361, %v362
        %v364 = vrot.slane %v363, 1
        %v365 = vadd.f32 %v363, %v364
        %v366 = vmul.f32 %v337, %v337
        %v367 = vmul.f32 %v338, %v338
        %v368 = vmul.f32 %v339, %v339
        %v369 = vmul.f32 %v340, %v340
        %v370 = vmul.f32 %v341, %v341
        %v371 = vmul.f32 %v342, %v342
        %v372 = vmul.f32 %v343, %v343
        %v373 = vmul.f32 %v344, %v344
        %v374 = vsel %vm325, %v366, 0.0
        %v375 = vsel %vm325, %v367, 0.0
        %v376 = vadd.f32 %v374, %v375
        %v377 = vsel %vm325, %v368, 0.0
        %v378 = vadd.f32 %v376, %v377
        %v379 = vsel %vm325, %v369, 0.0
        %v380 = vadd.f32 %v378, %v379
        %v381 = vsel %vm325, %v370, 0.0
        %v382 = vadd.f32 %v380, %v381
        %v383 = vsel %vm325, %v371, 0.0
        %v384 = vadd.f32 %v382, %v383
        %v385 = vsel %vm325, %v372, 0.0
        %v386 = vadd.f32 %v384, %v385
        %v387 = vsel %vm325, %v373, 0.0
        %v388 = vadd.f32 %v386, %v387
        %v389 = vrot.slane %v388, 4
        %v390 = vadd.f32 %v388, %v389
        %v391 = vrot.slane %v390, 2
        %v392 = vadd.f32 %v390, %v391
        %v393 = vrot.slane %v392, 1
        %v394 = vadd.f32 %v392, %v393
        %v395 = vmul.f32 %v365, 0.015625
        %v396 = vmul.f32 %v394, 0.015625
        %v397 = vmul.f32 %v395, %v395
        %v398 = vsub.f32 %v396, %v397
        %v399 = vmax.f32 %v398, 0.0
        %v400 = vadd.f32 %v399, 1e-05
        %v401 = vrsqrt.pop %v400
        %v402 = vsub.f32 %v337, %v395
        %v403 = vsub.f32 %v338, %v395
        %v404 = vsub.f32 %v339, %v395
        %v405 = vsub.f32 %v340, %v395
        %v406 = vsub.f32 %v341, %v395
        %v407 = vsub.f32 %v342, %v395
        %v408 = vsub.f32 %v343, %v395
        %v409 = vsub.f32 %v344, %v395
        %v410 = vmul.f32 %v402, %v401
        %v411 = vmul.f32 %v403, %v401
        %v412 = vmul.f32 %v404, %v401
        %v413 = vmul.f32 %v405, %v401
        %v414 = vmul.f32 %v406, %v401
        %v415 = vmul.f32 %v407, %v401
        %v416 = vmul.f32 %v408, %v401
        %v417 = vmul.f32 %v409, %v401
        %v418 = vmax.f32 %v410, 0.0
        %v419 = vmax.f32 %v411, 0.0
        %v420 = vmax.f32 %v412, 0.0
        %v421 = vmax.f32 %v413, 0.0
        %v422 = vmax.f32 %v414, 0.0
        %v423 = vmax.f32 %v415, 0.0
        %v424 = vmax.f32 %v416, 0.0
        %v425 = vmax.f32 %v417, 0.0
        %v426 = vpack.c.bf16 %v419, %v418
        %v427 = vpack.c.bf16 %v421, %v420
        %v428 = vpack.c.bf16 %v423, %v422
        %v429 = vpack.c.bf16 %v425, %v424
        %v434 = vunpack.c.l.b16 %v426
        %v435 = vunpack.c.h.b16 %v426
        %v436 = vunpack.c.l.b16 %v427
        %v437 = vunpack.c.h.b16 %v427
        %v438 = vunpack.c.l.b16 %v428
        %v439 = vunpack.c.h.b16 %v428
        %v440 = vunpack.c.l.b16 %v429
        %v441 = vunpack.c.h.b16 %v429
        %v442 = vpack.c.b16 %v434, %v434
        %v443 = vpack.c.b16 %v435, %v435
        %v444 = vpack.c.b16 %v436, %v436
        %v445 = vpack.c.b16 %v437, %v437
        %v446 = vpack.c.b16 %v438, %v438
        %v447 = vpack.c.b16 %v439, %v439
        %v448 = vpack.c.b16 %v440, %v440
        %v449 = vpack.c.b16 %v441, %v441
        %vm458 = vcmask 27648
        %459 = vst.msk [vmem:[%s183] sm:$0xf] %vm458, %v442
        %460 = vst.msk [vmem:[%s183 + $0x4] sm:$0xf] %vm458, %v443
        %461 = vst.msk [vmem:[%s183 + $0x8] sm:$0xf] %vm458, %v444
        %462 = vst.msk [vmem:[%s183 + $0xc] sm:$0xf] %vm458, %v445
        %463 = vst.msk [vmem:[%s183 + $0x10] sm:$0xf] %vm458, %v446
        %464 = vst.msk [vmem:[%s183 + $0x14] sm:$0xf] %vm458, %v447
        %465 = vst.msk [vmem:[%s183 + $0x18] sm:$0xf] %vm458, %v448
        %466 = vst.msk [vmem:[%s183 + $0x1c] sm:$0xf] %vm458, %v449
      $region36: #{bottleneck_in_forward.5} parent=27 // pred_fallthru
        _
      %p467 = scmp.lt.s32.totalorder %s17, 1
      %s468 = scalar_select %p467, %s17, 1
      %s469 = smul.addr %s468, 8
      %s470 = smul.addr %s469, 4
      %s471 = scalar_lea.vmem %s2, %s470
      // Predicated region
      $region37: #{bottleneck_in_forward.5} parent=27 // pred_check
        %p472 = pneg %p97
      $region38: #{bottleneck_in_forward.5} parent=27 // pred_check_branch
        %474 = sbr.rel (%p472) target = $region40
      $region39: #{bottleneck_in_forward.5} parent=27 // pred_region
        _
      $region40: #{bottleneck_in_forward.5} parent=27 // pred_fallthru
        _
    $region28: #{bottleneck_in_forward.5} parent=5 // pred_fallthru
      _
    %p475 = scmp.le.s32.totalorder 2, %s8
    // Predicated region
    $region41: #{bottleneck_in_forward.5} parent=5 // pred_check
      %p476 = pneg %p475
    $region42: #{bottleneck_in_forward.5} parent=5 // pred_check_branch
      %478 = sbr.rel (%p476) target = $region44
    $region43: #{bottleneck_in_forward.5} parent=5 // pred_region
      %s479 = ssub.s32 %s8, 2
      // Predicated region
      $region45: #{bottleneck_in_forward.5} parent=43 // pred_check
        %p480 = pneg %p103
      $region46: #{bottleneck_in_forward.5} parent=43 // pred_check_branch
        %482 = sbr.rel (%p480) target = $region48
      $region47: #{bottleneck_in_forward.5} parent=43 // pred_region
        %p483 = scmp.lt.s32.totalorder %s19, 1
        %s484 = scalar_select %p483, %s19, 1
        %s485 = smul.addr %s484, 8
        %s486 = smul.addr %s485, 4
        %s487 = scalar_lea.vmem %s2, %s486
      $region48: #{bottleneck_in_forward.5} parent=43 // pred_fallthru
        _
    $region44: #{bottleneck_in_forward.5} parent=5 // pred_fallthru
      _
  $region6: #{bottleneck_in_forward.5} parent=0 // loop_footer
    %s12 = sadd.s32 1, %s8
  $region7: #{bottleneck_in_forward.5} parent=0 // loop_footer_branch
    %7 = sbr.rel target = $region3
  $region8: #{bottleneck_in_forward.5} parent=0 // loop_exit
    _

// kernel: bottleneck_in_forward.7
$region0: #{bottleneck_in_forward.7}
  #allocation0 [shape = 'u32[]', space=smem, size = 0x4, offset = 0x4, fixed_abs, tag = 'smem constant byte address 0x4 - core index']
  #allocation1 [shape = 'u32[144,128]{1,0:T(1,128)}', space=vmem, size = 0x12000, scoped, tag = 'internal scratch']
  #allocation2 [shape = 'f32[16,16]{1,0:T(8,128)}', space=vmem, size = 0x2000, scoped, tag = 'scratch operand']
  %s0 = inlined_call_operand.vmem [shape: bf16[2,16,4], index: 0, kind: input, shape index: {}]
  %s1 = inlined_call_operand.vmem [shape: bf16[4,16], index: 1, kind: input, shape index: {}]
  %s2 = inlined_call_operand.vmem [shape: bf16[2,16,16], index: 2, kind: output, shape index: {}]
  %s3 = sld [smem:[#allocation0]]
  $region49: #{bottleneck_in_forward.7} parent=0
    _
  %s5 = ssub.s32 1, %s3
  %s6 = scalar_select 0, %s5, %s3
  loop: start=0, step=1, limit=4
  $region2: #{bottleneck_in_forward.7} parent=0 // loop_pre_header
    _
  $region3: #{bottleneck_in_forward.7} parent=0 // loop_header
    %s8 = sphi 0, %s12
    %p9 = scmp.ge.s32.totalorder %s8, 4
    %s15 = sphi 0, %s27
    %s16 = sphi 0, %s23
    %s17 = sphi 0, %s15
    %s18 = sphi 0, %s16
    %s19 = sphi 0, %s17
    %s20 = sphi 0, %s18
    %s32 = sphi 0, %s34
    %s35 = sphi 0, %s32
    %s36 = sphi 0, %s35
    %s52 = sphi 0, %s36
    %s58 = sphi 0, %s60
    %s61 = sphi 0, %s58
    %s62 = sphi 0, %s61
    %s78 = sphi 0, %s62
    %s84 = sphi 0, %s86
    %s87 = sphi 0, %s84
    %s88 = sphi 0, %s87
    %s104 = sphi 0, %s88
  $region4: #{bottleneck_in_forward.7} parent=0 // loop_header_branch
    %11 = sbr.rel (%p9) target = $region8
  $region5: #{bottleneck_in_forward.7} parent=0 // loop_body
    %s13 = ssub.s32 %s8, 1
    %s14 = ssub.s32 %s8, 2
    %s21 = sadd.s32 1, %s16
    %p22 = scmp.ge.s32.totalorder %s21, 1
    %s23 = scalar_select %p22, 0, %s21
    %s24 = sadd.s32 1, %s15
    %s25 = scalar_select %p22, %s24, %s15
    %p26 = scmp.ge.s32.totalorder %s25, 2
    %s27 = scalar_select %p26, 0, %s25
    %s28 = ssub.s32 %s15, %s27
    %s29 = ssub.s32 %s16, %s23
    %s30 = sor.u32 %s28, %s29
    %p31 = scmp.eq.s32.totalorder %s30, 0
    %s33 = sadd.s32 %s32, 1
    %s34 = scalar_select %p31, %s32, %s33
    %p37 = pneg %p31
    %p38 = scmp.eq.s32.totalorder %s8, 1
    %p39 = por %p37, %p38
    %p40 = scmp.ne.s32.totalorder %s32, %s35
    %p41 = scmp.eq.s32.totalorder %s8, 0
    %p42 = por %p40, %p41
    %p43 = scmp.ne.s32.totalorder %s32, %s35
    %p44 = scmp.eq.s32.totalorder %s13, 1
    %p45 = por %p43, %p44
    %p46 = scmp.ne.s32.totalorder %s35, %s36
    %p47 = scmp.eq.s32.totalorder %s13, 0
    %p48 = por %p46, %p47
    %p49 = scmp.ne.s32.totalorder %s35, %s36
    %p50 = scmp.eq.s32.totalorder %s14, 1
    %p51 = por %p49, %p50
    %p53 = scmp.ne.s32.totalorder %s36, %s52
    %p54 = scmp.eq.s32.totalorder %s14, 0
    %p55 = por %p53, %p54
    %s56 = ssub.s32 %s16, %s23
    %p57 = scmp.eq.s32.totalorder %s56, 0
    %s59 = sadd.s32 %s58, 1
    %s60 = scalar_select %p57, %s58, %s59
    %p63 = pneg %p57
    %p64 = scmp.eq.s32.totalorder %s8, 1
    %p65 = por %p63, %p64
    %p66 = scmp.ne.s32.totalorder %s58, %s61
    %p67 = scmp.eq.s32.totalorder %s8, 0
    %p68 = por %p66, %p67
    %p69 = scmp.ne.s32.totalorder %s58, %s61
    %p70 = scmp.eq.s32.totalorder %s13, 1
    %p71 = por %p69, %p70
    %p72 = scmp.ne.s32.totalorder %s61, %s62
    %p73 = scmp.eq.s32.totalorder %s13, 0
    %p74 = por %p72, %p73
    %p75 = scmp.ne.s32.totalorder %s61, %s62
    %p76 = scmp.eq.s32.totalorder %s14, 1
    %p77 = por %p75, %p76
    %p79 = scmp.ne.s32.totalorder %s62, %s78
    %p80 = scmp.eq.s32.totalorder %s14, 0
    %p81 = por %p79, %p80
    %s82 = ssub.s32 %s15, %s27
    %p83 = scmp.eq.s32.totalorder %s82, 0
    %s85 = sadd.s32 %s84, 1
    %s86 = scalar_select %p83, %s84, %s85
    %p89 = pneg %p83
    %p90 = scmp.eq.s32.totalorder %s8, 1
    %p91 = por %p89, %p90
    %p92 = scmp.ne.s32.totalorder %s84, %s87
    %p93 = scmp.eq.s32.totalorder %s8, 0
    %p94 = por %p92, %p93
    %p95 = scmp.ne.s32.totalorder %s84, %s87
    %p96 = scmp.eq.s32.totalorder %s13, 1
    %p97 = por %p95, %p96
    %p98 = scmp.ne.s32.totalorder %s87, %s88
    %p99 = scmp.eq.s32.totalorder %s13, 0
    %p100 = por %p98, %p99
    %p101 = scmp.ne.s32.totalorder %s87, %s88
    %p102 = scmp.eq.s32.totalorder %s14, 1
    %p103 = por %p101, %p102
    %p105 = scmp.ne.s32.totalorder %s88, %s104
    %p106 = scmp.eq.s32.totalorder %s14, 0
    %p107 = por %p105, %p106
    %p108 = scmp.le.s32.totalorder 1, %s8
    %p109 = scmp.lt.s32.totalorder %s8, 3
    %p110 = pnand %p108, %p109
    %p111 = pneg %p110
    // Predicated region
    $region9: #{bottleneck_in_forward.7} parent=5 // pred_check
      _
    $region10: #{bottleneck_in_forward.7} parent=5 // pred_check_branch
      %113 = sbr.rel (%p110) target = $region12
    $region11: #{bottleneck_in_forward.7} parent=5 // pred_region
      %s114 = ssub.s32 %s8, 1
      // Predicated region
      $region13: #{bottleneck_in_forward.7} parent=11 // pred_check
        %p115 = pneg %p74
      $region14: #{bottleneck_in_forward.7} parent=11 // pred_check_branch
        %117 = sbr.rel (%p115) target = $region16
      $region15: #{bottleneck_in_forward.7} parent=11 // pred_region
        %p118 = scmp.lt.s32.totalorder %s18, 0
        %s119 = scalar_select %p118, %s18, 0
        %s120 = smul.addr %s119, 2
        %s121 = scalar_lea.vmem %s1, %s120
      $region16: #{bottleneck_in_forward.7} parent=11 // pred_fallthru
        _
    $region12: #{bottleneck_in_forward.7} parent=5 // pred_fallthru
      _
    %p122 = scmp.lt.s32.totalorder %s8, 2
    // Predicated region
    $region17: #{bottleneck_in_forward.7} parent=5 // pred_check
      %p123 = pneg %p122
    $region18: #{bottleneck_in_forward.7} parent=5 // pred_check_branch
      %125 = sbr.rel (%p123) target = $region20
    $region19: #{bottleneck_in_forward.7} parent=5 // pred_region
      // Predicated region
      $region21: #{bottleneck_in_forward.7} parent=19 // pred_check
        %p126 = pneg %p42
      $region22: #{bottleneck_in_forward.7} parent=19 // pred_check_branch
        %128 = sbr.rel (%p126) target = $region24
      $region23: #{bottleneck_in_forward.7} parent=19 // pred_region
        %p129 = scmp.lt.s32.totalorder %s15, 1
        %s130 = scalar_select %p129, %s15, 1
        %p131 = scmp.lt.s32.totalorder %s16, 0
        %s132 = scalar_select %p131, %s16, 0
        %s133 = smul.addr %s130, 2
        %s134 = sadd.s32 %s132, %s133
        %s135 = smul.addr %s134, 4
        %s136 = scalar_lea.vmem %s0, %s135
      $region24: #{bottleneck_in_forward.7} parent=19 // pred_fallthru
        _
    $region20: #{bottleneck_in_forward.7} parent=5 // pred_fallthru
      _
    %p137 = scmp.le.s32.totalorder 1, %s8
    %p138 = scmp.lt.s32.totalorder %s8, 3
    %p139 = pnand %p137, %p138
    %p140 = pneg %p139
    // Predicated region
    $region25: #{bottleneck_in_forward.7} parent=5 // pred_check
      _
    $region26: #{bottleneck_in_forward.7} parent=5 // pred_check_branch
      %142 = sbr.rel (%p139) target = $region28
    $region27: #{bottleneck_in_forward.7} parent=5 // pred_region
      %s143 = ssub.s32 %s8, 1
      %p144 = scmp.lt.s32.totalorder %s17, 1
      %s145 = scalar_select %p144, %s17, 1
      %p146 = scmp.lt.s32.totalorder %s18, 0
      %s147 = scalar_select %p146, %s18, 0
      %s148 = smul.addr %s145, 2
      %s149 = sadd.s32 %s147, %s148
      %s150 = smul.addr %s149, 4
      %s151 = scalar_lea.vmem %s0, %s150
      %p152 = pneg %p48
      %p153 = pneg %p45
      %p154 = scmp.lt.s32.totalorder %s18, 0
      %s155 = scalar_select %p154, %s18, 0
      %s156 = smul.addr %s155, 2
      %s157 = scalar_lea.vmem %s1, %s156
      %p158 = pneg %p74
      %p159 = pneg %p71
      %p160 = pneg %p100
      %p161 = pneg %p97
      %p162 = scmp.lt.s32.totalorder %s17, 1
      %s163 = scalar_select %p162, %s17, 1
      %s164 = smul.addr %s163, 2
      %s165 = smul.addr %s164, 4
      %s166 = scalar_lea.vmem %s2, %s165
      %p167 = scmp.lt.s32.totalorder %s17, 1
      %s168 = scalar_select %p167, %s17, 1
      %p169 = scmp.lt.s32.totalorder %s18, 0
      %s170 = scalar_select %p169, %s18, 0
      %s171 = smul.addr %s168, 2
      %s172 = sadd.s32 %s170, %s171
      %s173 = smul.addr %s172, 4
      %s174 = scalar_lea.vmem %s0, %s173
      %p175 = scmp.lt.s32.totalorder %s18, 0
      %s176 = scalar_select %p175, %s18, 0
      %s177 = smul.addr %s176, 2
      %s178 = scalar_lea.vmem %s1, %s177
      %p179 = scmp.lt.s32.totalorder %s17, 1
      %s180 = scalar_select %p179, %s17, 1
      %s181 = smul.addr %s180, 2
      %s182 = smul.addr %s181, 4
      %s183 = scalar_lea.vmem %s2, %s182
      %p185 = scmp.eq.s32.totalorder %s18, 0
      // Predicated region
      $region29: #{bottleneck_in_forward.7} parent=27 // pred_check
        %p186 = pneg %p185
      $region30: #{bottleneck_in_forward.7} parent=27 // pred_check_branch
        %188 = sbr.rel (%p186) target = $region32
      $region31: #{bottleneck_in_forward.7} parent=27 // pred_region
        %vm189 = vcmask 130048
        %190 = vst.msk [vmem:[#allocation2] sm:$0xff] %vm189, 0.0
        %191 = vst.msk [vmem:[#allocation2 + $0x8] sm:$0xff] %vm189, 0.0
      $region32: #{bottleneck_in_forward.7} parent=27 // pred_fallthru
        _
      %v192 = vld [vmem:[#allocation2] sm:$0xff]
      %v193 = vld [vmem:[#allocation2 + $0x8] sm:$0xff]
      %v194 = vld [vmem:[%s174] sm:$0xf]
      %v195 = vld [vmem:[%s174 + $0x4] sm:$0xf]
      %v196 = vld [vmem:[%s178] sm:$0x3]
      %v199 = vunpack.c.l.b16 %v194
      %v200 = vunpack.c.l.b16 %v195
      %v201 = vpack.c.b16 %v200, %v199
      %vm202 = vcmask 31744
      %v204 = vsel %vm202, %v201, 0
      %vm206 = vcmask 1041408
      %v208 = vsel %vm206, %v196, 0
      %210 = vmatprep.subr.bf16.mxu0 0
      %211 = vmatpush1.bf16.msra.mxu0 %v208
      %212 = vmatprep.subr.bf16.mxu0 0
      %213 = vmatpush1.bf16.msra.mxu0 0
      %214 = vmatprep.subr.bf16.mxu0 0
      %215 = vmatpush1.bf16.msra.mxu0 0
      %216 = vmatprep.subr.bf16.mxu0 0
      %217 = vmatpush1.bf16.msra.mxu0 0
      %218 = vmatprep.subr.bf16.mxu0 0
      %219 = vmatpush1.bf16.msra.mxu0 0
      %220 = vmatprep.subr.bf16.mxu0 0
      %221 = vmatpush1.bf16.msra.mxu0 0
      %222 = vmatprep.subr.bf16.mxu0 0
      %223 = vmatpush1.bf16.msra.mxu0 0
      %224 = vmatprep.subr.bf16.mxu0 0
      %225 = vmatpush1.bf16.msra.mxu0 0
      %226 = vmatprep.subr.bf16.mxu0 0
      %227 = vmatpush1.bf16.msra.mxu0 0
      %228 = vmatprep.subr.bf16.mxu0 0
      %229 = vmatpush1.bf16.msra.mxu0 0
      %230 = vmatprep.subr.bf16.mxu0 0
      %231 = vmatpush1.bf16.msra.mxu0 0
      %232 = vmatprep.subr.bf16.mxu0 0
      %233 = vmatpush1.bf16.msra.mxu0 0
      %234 = vmatprep.subr.bf16.mxu0 0
      %235 = vmatpush1.bf16.msra.mxu0 0
      %236 = vmatprep.subr.bf16.mxu0 0
      %237 = vmatpush1.bf16.msra.mxu0 0
      %238 = vmatprep.subr.bf16.mxu0 0
      %239 = vmatpush1.bf16.msra.mxu0 0
      %240 = vmatprep.subr.bf16.mxu0 0
      %241 = vmatpush1.bf16.msra.mxu0 0
      %242 = vmatprep.mubr.bf16.mxu0 0
      %243 = vmatmul.mubr.bf16.gmra.mrb[0].mxu0 %v204
      %v244 = vpop.f32.mrb[0].mxu0
      %v245 = vadd.f32 0.0, %v244
      %v246 = vpop.f32.mrb[0].mxu0
      %v247 = vpop.f32.mrb[0].mxu0
      %v248 = vadd.f32 0.0, %v247
      %v249 = vpop.f32.mrb[0].mxu0
      %250 = vdwg.mxu0
      %v251 = vadd.f32 %v192, %v245
      %v252 = vadd.f32 %v193, %v248
      %vm253 = vcmask 130048
      %254 = vst.msk [vmem:[#allocation2] sm:$0xff] %vm253, %v251
      %255 = vst.msk [vmem:[#allocation2 + $0x8] sm:$0xff] %vm253, %v252
      // Predicated region
      $region33: #{bottleneck_in_forward.7} parent=27 // pred_check
        %p256 = pneg %p185
      $region34: #{bottleneck_in_forward.7} parent=27 // pred_check_branch
        %258 = sbr.rel (%p256) target = $region36
      $region35: #{bottleneck_in_forward.7} parent=27 // pred_region
        %v259 = vld [vmem:[#allocation2] sm:$0xff]
        %v260 = vld [vmem:[#allocation2 + $0x8] sm:$0xff]
        %v261 = vsel %vm253, %v259, 0.0
        %v262 = vsel %vm253, %v260, 0.0
        %v263 = vadd.f32 %v261, %v262
        %v264 = vrot.slane %v263, 4
        %v265 = vadd.f32 %v263, %v264
        %v266 = vrot.slane %v265, 2
        %v267 = vadd.f32 %v265, %v266
        %v268 = vrot.slane %v267, 1
        %v269 = vadd.f32 %v267, %v268
        %v270 = vmul.f32 %v259, %v259
        %v271 = vmul.f32 %v260, %v260
        %v272 = vsel %vm253, %v270, 0.0
        %v273 = vsel %vm253, %v271, 0.0
        %v274 = vadd.f32 %v272, %v273
        %v275 = vrot.slane %v274, 4
        %v276 = vadd.f32 %v274, %v275
        %v277 = vrot.slane %v276, 2
        %v278 = vadd.f32 %v276, %v277
        %v279 = vrot.slane %v278, 1
        %v280 = vadd.f32 %v278, %v279
        %v281 = vmul.f32 %v269, 0.0625
        %v282 = vmul.f32 %v280, 0.0625
        %v283 = vmul.f32 %v281, %v281
        %v284 = vsub.f32 %v282, %v283
        %v285 = vmax.f32 %v284, 0.0
        %v286 = vadd.f32 %v285, 1e-05
        %v287 = vrsqrt.pop %v286
        %v288 = vsub.f32 %v259, %v281
        %v289 = vsub.f32 %v260, %v281
        %v290 = vmul.f32 %v288, %v287
        %v291 = vmul.f32 %v289, %v287
        %v292 = vmax.f32 %v290, 0.0
        %v293 = vmax.f32 %v291, 0.0
        %v294 = vpack.c.bf16 %v293, %v292
        %v296 = vunpack.c.l.b16 %v294
        %v297 = vunpack.c.h.b16 %v294
        %v298 = vpack.c.b16 %v296, %v296
        %v299 = vpack.c.b16 %v297, %v297
        %vm302 = vcmask 125952
        %303 = vst.msk [vmem:[%s183] sm:$0xf] %vm302, %v298
        %304 = vst.msk [vmem:[%s183 + $0x4] sm:$0xf] %vm302, %v299
      $region36: #{bottleneck_in_forward.7} parent=27 // pred_fallthru
        _
      %p305 = scmp.lt.s32.totalorder %s17, 1
      %s306 = scalar_select %p305, %s17, 1
      %s307 = smul.addr %s306, 2
      %s308 = smul.addr %s307, 4
      %s309 = scalar_lea.vmem %s2, %s308
      // Predicated region
      $region37: #{bottleneck_in_forward.7} parent=27 // pred_check
        %p310 = pneg %p97
      $region38: #{bottleneck_in_forward.7} parent=27 // pred_check_branch
        %312 = sbr.rel (%p310) target = $region40
      $region39: #{bottleneck_in_forward.7} parent=27 // pred_region
        _
      $region40: #{bottleneck_in_forward.7} parent=27 // pred_fallthru
        _
    $region28: #{bottleneck_in_forward.7} parent=5 // pred_fallthru
      _
    %p313 = scmp.le.s32.totalorder 2, %s8
    // Predicated region
    $region41: #{bottleneck_in_forward.7} parent=5 // pred_check
      %p314 = pneg %p313
    $region42: #{bottleneck_in_forward.7} parent=5 // pred_check_branch
      %316 = sbr.rel (%p314) target = $region44
    $region43: #{bottleneck_in_forward.7} parent=5 // pred_region
      %s317 = ssub.s32 %s8, 2
      // Predicated region
      $region45: #{bottleneck_in_forward.7} parent=43 // pred_check
        %p318 = pneg %p103
      $region46: #{bottleneck_in_forward.7} parent=43 // pred_check_branch
        %320 = sbr.rel (%p318) target = $region48
      $region47: #{bottleneck_in_forward.7} parent=43 // pred_region
        %p321 = scmp.lt.s32.totalorder %s19, 1
        %s322 = scalar_select %p321, %s19, 1
        %s323 = smul.addr %s322, 2
        %s324 = smul.addr %s323, 4
        %s325 = scalar_lea.vmem %s2, %s324
      $region48: #{bottleneck_in_forward.7} parent=43 // pred_fallthru
        _
    $region44: #{bottleneck_in_forward.7} parent=5 // pred_fallthru
      _
  $region6: #{bottleneck_in_forward.7} parent=0 // loop_footer
    %s12 = sadd.s32 1, %s8
  $region7: #{bottleneck_in_forward.7} parent=0 // loop_footer_branch
    %7 = sbr.rel target = $region3
  $region8: #{bottleneck_in_forward.7} parent=0 // loop_exit
    _

// kernel: bottleneck_in_forward.6
$region0: #{bottleneck_in_forward.6}
  #allocation0 [shape = 'u32[]', space=smem, size = 0x4, offset = 0x4, fixed_abs, tag = 'smem constant byte address 0x4 - core index']
  #allocation1 [shape = 'u32[144,128]{1,0:T(1,128)}', space=vmem, size = 0x12000, scoped, tag = 'internal scratch']
  #allocation2 [shape = 'f32[16,4]{1,0:T(8,128)}', space=vmem, size = 0x2000, scoped, tag = 'scratch operand']
  %s0 = inlined_call_operand.vmem [shape: bf16[2,16,36], index: 0, kind: input, shape index: {}]
  %s1 = inlined_call_operand.vmem [shape: bf16[36,4], index: 1, kind: input, shape index: {}]
  %s2 = inlined_call_operand.vmem [shape: bf16[2,16,4], index: 2, kind: output, shape index: {}]
  %s3 = sld [smem:[#allocation0]]
  $region49: #{bottleneck_in_forward.6} parent=0
    _
  %s5 = ssub.s32 1, %s3
  %s6 = scalar_select 0, %s5, %s3
  loop: start=0, step=1, limit=4
  $region2: #{bottleneck_in_forward.6} parent=0 // loop_pre_header
    _
  $region3: #{bottleneck_in_forward.6} parent=0 // loop_header
    %s8 = sphi 0, %s12
    %p9 = scmp.ge.s32.totalorder %s8, 4
    %s15 = sphi 0, %s27
    %s16 = sphi 0, %s23
    %s17 = sphi 0, %s15
    %s18 = sphi 0, %s16
    %s19 = sphi 0, %s17
    %s20 = sphi 0, %s18
    %s32 = sphi 0, %s34
    %s35 = sphi 0, %s32
    %s36 = sphi 0, %s35
    %s52 = sphi 0, %s36
    %s58 = sphi 0, %s60
    %s61 = sphi 0, %s58
    %s62 = sphi 0, %s61
    %s78 = sphi 0, %s62
    %s84 = sphi 0, %s86
    %s87 = sphi 0, %s84
    %s88 = sphi 0, %s87
    %s104 = sphi 0, %s88
  $region4: #{bottleneck_in_forward.6} parent=0 // loop_header_branch
    %11 = sbr.rel (%p9) target = $region8
  $region5: #{bottleneck_in_forward.6} parent=0 // loop_body
    %s13 = ssub.s32 %s8, 1
    %s14 = ssub.s32 %s8, 2
    %s21 = sadd.s32 1, %s16
    %p22 = scmp.ge.s32.totalorder %s21, 1
    %s23 = scalar_select %p22, 0, %s21
    %s24 = sadd.s32 1, %s15
    %s25 = scalar_select %p22, %s24, %s15
    %p26 = scmp.ge.s32.totalorder %s25, 2
    %s27 = scalar_select %p26, 0, %s25
    %s28 = ssub.s32 %s15, %s27
    %s29 = ssub.s32 %s16, %s23
    %s30 = sor.u32 %s28, %s29
    %p31 = scmp.eq.s32.totalorder %s30, 0
    %s33 = sadd.s32 %s32, 1
    %s34 = scalar_select %p31, %s32, %s33
    %p37 = pneg %p31
    %p38 = scmp.eq.s32.totalorder %s8, 1
    %p39 = por %p37, %p38
    %p40 = scmp.ne.s32.totalorder %s32, %s35
    %p41 = scmp.eq.s32.totalorder %s8, 0
    %p42 = por %p40, %p41
    %p43 = scmp.ne.s32.totalorder %s32, %s35
    %p44 = scmp.eq.s32.totalorder %s13, 1
    %p45 = por %p43, %p44
    %p46 = scmp.ne.s32.totalorder %s35, %s36
    %p47 = scmp.eq.s32.totalorder %s13, 0
    %p48 = por %p46, %p47
    %p49 = scmp.ne.s32.totalorder %s35, %s36
    %p50 = scmp.eq.s32.totalorder %s14, 1
    %p51 = por %p49, %p50
    %p53 = scmp.ne.s32.totalorder %s36, %s52
    %p54 = scmp.eq.s32.totalorder %s14, 0
    %p55 = por %p53, %p54
    %s56 = ssub.s32 %s16, %s23
    %p57 = scmp.eq.s32.totalorder %s56, 0
    %s59 = sadd.s32 %s58, 1
    %s60 = scalar_select %p57, %s58, %s59
    %p63 = pneg %p57
    %p64 = scmp.eq.s32.totalorder %s8, 1
    %p65 = por %p63, %p64
    %p66 = scmp.ne.s32.totalorder %s58, %s61
    %p67 = scmp.eq.s32.totalorder %s8, 0
    %p68 = por %p66, %p67
    %p69 = scmp.ne.s32.totalorder %s58, %s61
    %p70 = scmp.eq.s32.totalorder %s13, 1
    %p71 = por %p69, %p70
    %p72 = scmp.ne.s32.totalorder %s61, %s62
    %p73 = scmp.eq.s32.totalorder %s13, 0
    %p74 = por %p72, %p73
    %p75 = scmp.ne.s32.totalorder %s61, %s62
    %p76 = scmp.eq.s32.totalorder %s14, 1
    %p77 = por %p75, %p76
    %p79 = scmp.ne.s32.totalorder %s62, %s78
    %p80 = scmp.eq.s32.totalorder %s14, 0
    %p81 = por %p79, %p80
    %s82 = ssub.s32 %s15, %s27
    %p83 = scmp.eq.s32.totalorder %s82, 0
    %s85 = sadd.s32 %s84, 1
    %s86 = scalar_select %p83, %s84, %s85
    %p89 = pneg %p83
    %p90 = scmp.eq.s32.totalorder %s8, 1
    %p91 = por %p89, %p90
    %p92 = scmp.ne.s32.totalorder %s84, %s87
    %p93 = scmp.eq.s32.totalorder %s8, 0
    %p94 = por %p92, %p93
    %p95 = scmp.ne.s32.totalorder %s84, %s87
    %p96 = scmp.eq.s32.totalorder %s13, 1
    %p97 = por %p95, %p96
    %p98 = scmp.ne.s32.totalorder %s87, %s88
    %p99 = scmp.eq.s32.totalorder %s13, 0
    %p100 = por %p98, %p99
    %p101 = scmp.ne.s32.totalorder %s87, %s88
    %p102 = scmp.eq.s32.totalorder %s14, 1
    %p103 = por %p101, %p102
    %p105 = scmp.ne.s32.totalorder %s88, %s104
    %p106 = scmp.eq.s32.totalorder %s14, 0
    %p107 = por %p105, %p106
    %p108 = scmp.le.s32.totalorder 1, %s8
    %p109 = scmp.lt.s32.totalorder %s8, 3
    %p110 = pnand %p108, %p109
    %p111 = pneg %p110
    // Predicated region
    $region9: #{bottleneck_in_forward.6} parent=5 // pred_check
      _
    $region10: #{bottleneck_in_forward.6} parent=5 // pred_check_branch
      %113 = sbr.rel (%p110) target = $region12
    $region11: #{bottleneck_in_forward.6} parent=5 // pred_region
      %s114 = ssub.s32 %s8, 1
      // Predicated region
      $region13: #{bottleneck_in_forward.6} parent=11 // pred_check
        %p115 = pneg %p74
      $region14: #{bottleneck_in_forward.6} parent=11 // pred_check_branch
        %117 = sbr.rel (%p115) target = $region16
      $region15: #{bottleneck_in_forward.6} parent=11 // pred_region
        %s118 = smul.u32 5, %s18
        %p119 = scmp.lt.s32.totalorder %s118, 4
        %s120 = scalar_select %p119, %s118, 4
        %s121 = smul.addr %s120, 4
        %s122 = scalar_lea.vmem %s1, %s121
        %s123 = smul.u32 5, %s18
      $region16: #{bottleneck_in_forward.6} parent=11 // pred_fallthru
        _
    $region12: #{bottleneck_in_forward.6} parent=5 // pred_fallthru
      _
    %p124 = scmp.lt.s32.totalorder %s8, 2
    // Predicated region
    $region17: #{bottleneck_in_forward.6} parent=5 // pred_check
      %p125 = pneg %p124
    $region18: #{bottleneck_in_forward.6} parent=5 // pred_check_branch
      %127 = sbr.rel (%p125) target = $region20
    $region19: #{bottleneck_in_forward.6} parent=5 // pred_region
      // Predicated region
      $region21: #{bottleneck_in_forward.6} parent=19 // pred_check
        %p128 = pneg %p42
      $region22: #{bottleneck_in_forward.6} parent=19 // pred_check_branch
        %130 = sbr.rel (%p128) target = $region24
      $region23: #{bottleneck_in_forward.6} parent=19 // pred_region
        %p131 = scmp.lt.s32.totalorder %s15, 1
        %s132 = scalar_select %p131, %s15, 1
        %p133 = scmp.lt.s32.totalorder %s16, 0
        %s134 = scalar_select %p133, %s16, 0
        %s135 = smul.addr %s132, 2
        %s136 = sadd.s32 %s134, %s135
        %s137 = smul.addr %s136, 4
        %s138 = scalar_lea.vmem %s0, %s137
      $region24: #{bottleneck_in_forward.6} parent=19 // pred_fallthru
        _
    $region20: #{bottleneck_in_forward.6} parent=5 // pred_fallthru
      _
    %p139 = scmp.le.s32.totalorder 1, %s8
    %p140 = scmp.lt.s32.totalorder %s8, 3
    %p141 = pnand %p139, %p140
    %p142 = pneg %p141
    // Predicated region
    $region25: #{bottleneck_in_forward.6} parent=5 // pred_check
      _
    $region26: #{bottleneck_in_forward.6} parent=5 // pred_check_branch
      %144 = sbr.rel (%p141) target = $region28
    $region27: #{bottleneck_in_forward.6} parent=5 // pred_region
      %s145 = ssub.s32 %s8, 1
      %p146 = scmp.lt.s32.totalorder %s17, 1
      %s147 = scalar_select %p146, %s17, 1
      %p148 = scmp.lt.s32.totalorder %s18, 0
      %s149 = scalar_select %p148, %s18, 0
      %s150 = smul.addr %s147, 2
      %s151 = sadd.s32 %s149, %s150
      %s152 = smul.addr %s151, 4
      %s153 = scalar_lea.vmem %s0, %s152
      %p154 = pneg %p48
      %p155 = pneg %p45
      %s156 = smul.u32 5, %s18
      %p157 = scmp.lt.s32.totalorder %s156, 4
      %s158 = scalar_select %p157, %s156, 4
      %s159 = smul.addr %s158, 4
      %s160 = scalar_lea.vmem %s1, %s159
      %p161 = pneg %p74
      %p162 = pneg %p71
      %p163 = pneg %p100
      %p164 = pneg %p97
      %p165 = scmp.lt.s32.totalorder %s17, 1
      %s166 = scalar_select %p165, %s17, 1
      %s167 = smul.addr %s166, 2
      %s168 = smul.addr %s167, 4
      %s169 = scalar_lea.vmem %s2, %s168
      %p170 = scmp.lt.s32.totalorder %s17, 1
      %s171 = scalar_select %p170, %s17, 1
      %p172 = scmp.lt.s32.totalorder %s18, 0
      %s173 = scalar_select %p172, %s18, 0
      %s174 = smul.addr %s171, 2
      %s175 = sadd.s32 %s173, %s174
      %s176 = smul.addr %s175, 4
      %s177 = scalar_lea.vmem %s0, %s176
      %s178 = smul.u32 5, %s18
      %p179 = scmp.lt.s32.totalorder %s178, 4
      %s180 = scalar_select %p179, %s178, 4
      %s181 = smul.addr %s180, 4
      %s182 = scalar_lea.vmem %s1, %s181
      %s183 = smul.u32 5, %s18
      %p184 = scmp.lt.s32.totalorder %s17, 1
      %s185 = scalar_select %p184, %s17, 1
      %s186 = smul.addr %s185, 2
      %s187 = smul.addr %s186, 4
      %s188 = scalar_lea.vmem %s2, %s187
      %p190 = scmp.eq.s32.totalorder %s18, 0
      // Predicated region
      $region29: #{bottleneck_in_forward.6} parent=27 // pred_check
        %p191 = pneg %p190
      $region30: #{bottleneck_in_forward.6} parent=27 // pred_check_branch
        %193 = sbr.rel (%p191) target = $region32
      $region31: #{bottleneck_in_forward.6} parent=27 // pred_region
        %vm194 = vcmask 31744
        %195 = vst.msk [vmem:[#allocation2] sm:$0xff] %vm194, 0.0
        %196 = vst.msk [vmem:[#allocation2 + $0x8] sm:$0xff] %vm194, 0.0
      $region32: #{bottleneck_in_forward.6} parent=27 // pred_fallthru
        _
      %v197 = vld [vmem:[#allocation2] sm:$0xff]
      %v198 = vld [vmem:[#allocation2 + $0x8] sm:$0xff]
      %v199 = vld [vmem:[%s177] sm:$0xf]
      %v200 = vld [vmem:[%s177 + $0x4] sm:$0xf]
      %v201 = vld [vmem:[%s182] sm:$0xf]
      %v202 = vld [vmem:[%s182 + $0x4] sm:$0xf]
      %v203 = vld [vmem:[%s182 + $0x8] sm:$0xf]
      %v204 = vld [vmem:[%s182 + $0xc] sm:$0xf]
      %v205 = vld [vmem:[%s182 + $0x10] sm:$0x3]
      %v208 = vunpack.c.l.b16 %v199
      %v209 = vunpack.c.l.b16 %v200
      %v210 = vpack.c.b16 %v209, %v208
      %v216 = vunpack.c.l.b16 %v201
      %v217 = vunpack.c.l.b16 %v202
      %v218 = vunpack.c.l.b16 %v203
      %v219 = vunpack.c.l.b16 %v204
      %v220 = vunpack.c.l.b16 %v205
      %v221 = vpack.c.b16 %v217, %v216
      %v222 = vpack.c.b16 %v219, %v218
      %v223 = vpack.c.b16 %v220, %v220
      %vm226 = vcmask 293888
      %v228 = vsel %vm226, %v210, 0
      %vm230 = vcmask 1041408
      %v232 = vsel %vm230, %v223, 0
      %234 = vmatprep.subr.bf16.mxu0 0
      %235 = vmatpush1.bf16.msra.mxu0 %v221
      %236 = vmatprep.subr.bf16.mxu0 0
      %237 = vmatpush1.bf16.msra.mxu0 %v222
      %238 = vmatprep.subr.bf16.mxu0 0
      %239 = vmatpush1.bf16.msra.mxu0 %v232
      %240 = vmatprep.subr.bf16.mxu0 0
      %241 = vmatpush1.bf16.msra.mxu0 0
      %242 = vmatprep.subr.bf16.mxu0 0
      %243 = vmatpush1.bf16.msra.mxu0 0
      %244 = vmatprep.subr.bf16.mxu0 0
      %245 = vmatpush1.bf16.msra.mxu0 0
      %246 = vmatprep.subr.bf16.mxu0 0
      %247 = vmatpush1.bf16.msra.mxu0 0
      %248 = vmatprep.subr.bf16.mxu0 0
      %249 = vmatpush1.bf16.msra.mxu0 0
      %250 = vmatprep.subr.bf16.mxu0 0
      %251 = vmatpush1.bf16.msra.mxu0 0
      %252 = vmatprep.subr.bf16.mxu0 0
      %253 = vmatpush1.bf16.msra.mxu0 0
      %254 = vmatprep.subr.bf16.mxu0 0
      %255 = vmatpush1.bf16.msra.mxu0 0
      %256 = vmatprep.subr.bf16.mxu0 0
      %257 = vmatpush1.bf16.msra.mxu0 0
      %258 = vmatprep.subr.bf16.mxu0 0
      %259 = vmatpush1.bf16.msra.mxu0 0
      %260 = vmatprep.subr.bf16.mxu0 0
      %261 = vmatpush1.bf16.msra.mxu0 0
      %262 = vmatprep.subr.bf16.mxu0 0
      %263 = vmatpush1.bf16.msra.mxu0 0
      %264 = vmatprep.subr.bf16.mxu0 0
      %265 = vmatpush1.bf16.msra.mxu0 0
      %266 = vmatprep.mubr.bf16.mxu0 0
      %267 = vmatmul.mubr.bf16.gmra.mrb[0].mxu0 %v228
      %v268 = vpop.f32.mrb[0].mxu0
      %v269 = vadd.f32 0.0, %v268
      %v270 = vpop.f32.mrb[0].mxu0
      %v271 = vpop.f32.mrb[0].mxu0
      %v272 = vadd.f32 0.0, %v271
      %v273 = vpop.f32.mrb[0].mxu0
      %274 = vdwg.mxu0
      %v275 = vadd.f32 %v197, %v269
      %v276 = vadd.f32 %v198, %v272
      %vm277 = vcmask 31744
      %278 = vst.msk [vmem:[#allocation2] sm:$0xff] %vm277, %v275
      %279 = vst.msk [vmem:[#allocation2 + $0x8] sm:$0xff] %vm277, %v276
      // Predicated region
      $region33: #{bottleneck_in_forward.6} parent=27 // pred_check
        %p280 = pneg %p190
      $region34: #{bottleneck_in_forward.6} parent=27 // pred_check_branch
        %282 = sbr.rel (%p280) target = $region36
      $region35: #{bottleneck_in_forward.6} parent=27 // pred_region
        %v283 = vld [vmem:[#allocation2] sm:$0xff]
        %v284 = vld [vmem:[#allocation2 + $0x8] sm:$0xff]
        %v285 = vsel %vm277, %v283, 0.0
        %v286 = vsel %vm277, %v284, 0.0
        %v287 = vadd.f32 %v285, %v286
        %v288 = vrot.slane %v287, 4
        %v289 = vadd.f32 %v287, %v288
        %v290 = vrot.slane %v289, 2
        %v291 = vadd.f32 %v289, %v290
        %v292 = vrot.slane %v291, 1
        %v293 = vadd.f32 %v291, %v292
        %v294 = vmul.f32 %v283, %v283
        %v295 = vmul.f32 %v284, %v284
        %v296 = vsel %vm277, %v294, 0.0
        %v297 = vsel %vm277, %v295, 0.0
        %v298 = vadd.f32 %v296, %v297
        %v299 = vrot.slane %v298, 4
        %v300 = vadd.f32 %v298, %v299
        %v301 = vrot.slane %v300, 2
        %v302 = vadd.f32 %v300, %v301
        %v303 = vrot.slane %v302, 1
        %v304 = vadd.f32 %v302, %v303
        %v305 = vmul.f32 %v293, 0.0625
        %v306 = vmul.f32 %v304, 0.0625
        %v307 = vmul.f32 %v305, %v305
        %v308 = vsub.f32 %v306, %v307
        %v309 = vmax.f32 %v308, 0.0
        %v310 = vadd.f32 %v309, 1e-05
        %v311 = vrsqrt.pop %v310
        %v312 = vsub.f32 %v283, %v305
        %v313 = vsub.f32 %v284, %v305
        %v314 = vmul.f32 %v312, %v311
        %v315 = vmul.f32 %v313, %v311
        %v316 = vmax.f32 %v314, 0.0
        %v317 = vmax.f32 %v315, 0.0
        %v318 = vpack.c.bf16 %v317, %v316
        %v320 = vunpack.c.l.b16 %v318
        %v321 = vunpack.c.h.b16 %v318
        %v322 = vpack.c.b16 %v320, %v320
        %v323 = vpack.c.b16 %v321, %v321
        %vm326 = vcmask 27648
        %327 = vst.msk [vmem:[%s188] sm:$0xf] %vm326, %v322
        %328 = vst.msk [vmem:[%s188 + $0x4] sm:$0xf] %vm326, %v323
      $region36: #{bottleneck_in_forward.6} parent=27 // pred_fallthru
        _
      %p329 = scmp.lt.s32.totalorder %s17, 1
      %s330 = scalar_select %p329, %s17, 1
      %s331 = smul.addr %s330, 2
      %s332 = smul.addr %s331, 4
      %s333 = scalar_lea.vmem %s2, %s332
      // Predicated region
      $region37: #{bottleneck_in_forward.6} parent=27 // pred_check
        %p334 = pneg %p97
      $region38: #{bottleneck_in_forward.6} parent=27 // pred_check_branch
        %336 = sbr.rel (%p334) target = $region40
      $region39: #{bottleneck_in_forward.6} parent=27 // pred_region
        _
      $region40: #{bottleneck_in_forward.6} parent=27 // pred_fallthru
        _
    $region28: #{bottleneck_in_forward.6} parent=5 // pred_fallthru
      _
    %p337 = scmp.le.s32.totalorder 2, %s8
    // Predicated region
    $region41: #{bottleneck_in_forward.6} parent=5 // pred_check
      %p338 = pneg %p337
    $region42: #{bottleneck_in_forward.6} parent=5 // pred_check_branch
      %340 = sbr.rel (%p338) target = $region44
    $region43: #{bottleneck_in_forward.6} parent=5 // pred_region
      %s341 = ssub.s32 %s8, 2
      // Predicated region
      $region45: #{bottleneck_in_forward.6} parent=43 // pred_check
        %p342 = pneg %p103
      $region46: #{bottleneck_in_forward.6} parent=43 // pred_check_branch
        %344 = sbr.rel (%p342) target = $region48
      $region47: #{bottleneck_in_forward.6} parent=43 // pred_region
        %p345 = scmp.lt.s32.totalorder %s19, 1
        %s346 = scalar_select %p345, %s19, 1
        %s347 = smul.addr %s346, 2
        %s348 = smul.addr %s347, 4
        %s349 = scalar_lea.vmem %s2, %s348
      $region48: #{bottleneck_in_forward.6} parent=43 // pred_fallthru
        _
    $region44: #{bottleneck_in_forward.6} parent=5 // pred_fallthru
      _
  $region6: #{bottleneck_in_forward.6} parent=0 // loop_footer
    %s12 = sadd.s32 1, %s8
  $region7: #{bottleneck_in_forward.6} parent=0 // loop_footer_branch
    %7 = sbr.rel target = $region3
  $region8: #{bottleneck_in_forward.6} parent=0 // loop_exit
    _

// kernel: bottleneck_in_forward.9
$region0: #{bottleneck_in_forward.9}
  #allocation0 [shape = 'u32[]', space=smem, size = 0x4, offset = 0x4, fixed_abs, tag = 'smem constant byte address 0x4 - core index']
  #allocation1 [shape = 'u32[144,128]{1,0:T(1,128)}', space=vmem, size = 0x12000, scoped, tag = 'internal scratch']
  %s0 = inlined_call_operand.vmem [shape: bf16[2,16,16], index: 0, kind: input, shape index: {}]
  %s1 = inlined_call_operand.vmem [shape: bf16[2,16,16], index: 1, kind: input, shape index: {}]
  %s2 = inlined_call_operand.vmem [shape: f32[1,1,16], index: 2, kind: input, shape index: {}]
  %s3 = inlined_call_operand.vmem [shape: f32[1,1,16], index: 3, kind: input, shape index: {}]
  %s4 = inlined_call_operand.vmem [shape: f32[1,1,16], index: 4, kind: input, shape index: {}]
  %s5 = inlined_call_operand.vmem [shape: f32[1,1,16], index: 5, kind: input, shape index: {}]
  %s6 = inlined_call_operand.hbm [shape: f32[2,16,16], index: 6, kind: output, shape index: {}]
  %s7 = sld [smem:[#allocation0]]
  $region57: #{bottleneck_in_forward.9} parent=0
    _
  %s9 = ssub.s32 1, %s7
  %s10 = scalar_select 0, %s9, %s7
  $region1: #{bottleneck_in_forward.9} parent=0
    #allocation2 [shape = 'u8[16384]{0}', space=vmem, size = 0x4000, scoped, tag = 'output window, operand 0']
    #allocation3 [shape = 's32[2]{0}', space=sflag, size = 0x8, scoped, tag = 'scoped memory for bottleneck_in_forward.9']
    %11 = vsyncpa [#allocation3], 0
    %s12 = scalar_lea.sflag [#allocation3], 1
    %13 = vsyncpa %s12, 0
    loop: start=0, step=1, limit=4
    $region2: #{bottleneck_in_forward.9} parent=1 // loop_pre_header
      _
    $region3: #{bottleneck_in_forward.9} parent=1 // loop_header
      %s15 = sphi 0, %s19
      %p16 = scmp.ge.s32.totalorder %s15, 4
      %s22 = sphi 0, %s34
      %s23 = sphi 0, %s30
      %s24 = sphi 0, %s22
      %s25 = sphi 0, %s23
      %s26 = sphi 0, %s24
      %s27 = sphi 0, %s25
      %s39 = sphi 0, %s41
      %s42 = sphi 0, %s39
      %s43 = sphi 0, %s42
      %s59 = sphi 0, %s43
      %s67 = sphi 0, %s69
      %s70 = sphi 0, %s67
      %s71 = sphi 0, %s70
      %s87 = sphi 0, %s71
      %s91 = sphi 0, %s91
      %s93 = sphi 0, %s91
      %s94 = sphi 0, %s93
      %s108 = sphi 0, %s94
      %s112 = sphi 0, %s112
      %s114 = sphi 0, %s112
      %s115 = sphi 0, %s114
      %s129 = sphi 0, %s115
      %s133 = sphi 0, %s133
      %s135 = sphi 0, %s133
      %s136 = sphi 0, %s135
      %s150 = sphi 0, %s136
      %s154 = sphi 0, %s154
      %s156 = sphi 0, %s154
      %s157 = sphi 0, %s156
      %s171 = sphi 0, %s157
      %s179 = sphi 0, %s181
      %s182 = sphi 0, %s179
      %s183 = sphi 0, %s182
      %s199 = sphi 0, %s183
    $region4: #{bottleneck_in_forward.9} parent=1 // loop_header_branch
      %18 = sbr.rel (%p16) target = $region8
    $region5: #{bottleneck_in_forward.9} parent=1 // loop_body
      %s20 = ssub.s32 %s15, 1
      %s21 = ssub.s32 %s15, 2
      %s28 = sadd.s32 1, %s23
      %p29 = scmp.ge.s32.totalorder %s28, 1
      %s30 = scalar_select %p29, 0, %s28
      %s31 = sadd.s32 1, %s22
      %s32 = scalar_select %p29, %s31, %s22
      %p33 = scmp.ge.s32.totalorder %s32, 2
      %s34 = scalar_select %p33, 0, %s32
      %s35 = ssub.s32 %s22, %s34
      %s36 = ssub.s32 %s23, %s30
      %s37 = sor.u32 %s35, %s36
      %p38 = scmp.eq.s32.totalorder %s37, 0
      %s40 = sadd.s32 %s39, 1
      %s41 = scalar_select %p38, %s39, %s40
      %p44 = pneg %p38
      %p45 = scmp.eq.s32.totalorder %s15, 1
      %p46 = por %p44, %p45
      %p47 = scmp.ne.s32.totalorder %s39, %s42
      %p48 = scmp.eq.s32.totalorder %s15, 0
      %p49 = por %p47, %p48
      %p50 = scmp.ne.s32.totalorder %s39, %s42
      %p51 = scmp.eq.s32.totalorder %s20, 1
      %p52 = por %p50, %p51
      %p53 = scmp.ne.s32.totalorder %s42, %s43
      %p54 = scmp.eq.s32.totalorder %s20, 0
      %p55 = por %p53, %p54
      %p56 = scmp.ne.s32.totalorder %s42, %s43
      %p57 = scmp.eq.s32.totalorder %s21, 1
      %p58 = por %p56, %p57
      %p60 = scmp.ne.s32.totalorder %s43, %s59
      %p61 = scmp.eq.s32.totalorder %s21, 0
      %p62 = por %p60, %p61
      %s63 = ssub.s32 %s22, %s34
      %s64 = ssub.s32 %s23, %s30
      %s65 = sor.u32 %s63, %s64
      %p66 = scmp.eq.s32.totalorder %s65, 0
      %s68 = sadd.s32 %s67, 1
      %s69 = scalar_select %p66, %s67, %s68
      %p72 = pneg %p66
      %p73 = scmp.eq.s32.totalorder %s15, 1
      %p74 = por %p72, %p73
      %p75 = scmp.ne.s32.totalorder %s67, %s70
      %p76 = scmp.eq.s32.totalorder %s15, 0
      %p77 = por %p75, %p76
      %p78 = scmp.ne.s32.totalorder %s67, %s70
      %p79 = scmp.eq.s32.totalorder %s20, 1
      %p80 = por %p78, %p79
      %p81 = scmp.ne.s32.totalorder %s70, %s71
      %p82 = scmp.eq.s32.totalorder %s20, 0
      %p83 = por %p81, %p82
      %p84 = scmp.ne.s32.totalorder %s70, %s71
      %p85 = scmp.eq.s32.totalorder %s21, 1
      %p86 = por %p84, %p85
      %p88 = scmp.ne.s32.totalorder %s71, %s87
      %p89 = scmp.eq.s32.totalorder %s21, 0
      %p90 = por %p88, %p89
      %s92 = sadd.s32 %s91, 1
      %p95 = scmp.eq.s32.totalorder %s15, 1
      %p96 = scmp.ne.s32.totalorder %s91, %s93
      %p97 = scmp.eq.s32.totalorder %s15, 0
      %p98 = por %p96, %p97
      %p99 = scmp.ne.s32.totalorder %s91, %s93
      %p100 = scmp.eq.s32.totalorder %s20, 1
      %p101 = por %p99, %p100
      %p102 = scmp.ne.s32.totalorder %s93, %s94
      %p103 = scmp.eq.s32.totalorder %s20, 0
      %p104 = por %p102, %p103
      %p105 = scmp.ne.s32.totalorder %s93, %s94
      %p106 = scmp.eq.s32.totalorder %s21, 1
      %p107 = por %p105, %p106
      %p109 = scmp.ne.s32.totalorder %s94, %s108
      %p110 = scmp.eq.s32.totalorder %s21, 0
      %p111 = por %p109, %p110
      %s113 = sadd.s32 %s112, 1
      %p116 = scmp.eq.s32.totalorder %s15, 1
      %p117 = scmp.ne.s32.totalorder %s112, %s114
      %p118 = scmp.eq.s32.totalorder %s15, 0
      %p119 = por %p117, %p118
      %p120 = scmp.ne.s32.totalorder %s112, %s114
      %p121 = scmp.eq.s32.totalorder %s20, 1
      %p122 = por %p120, %p121
      %p123 = scmp.ne.s32.totalorder %s114, %s115
      %p124 = scmp.eq.s32.totalorder %s20, 0
      %p125 = por %p123, %p124
      %p126 = scmp.ne.s32.totalorder %s114, %s115
      %p127 = scmp.eq.s32.totalorder %s21, 1
      %p128 = por %p126, %p127
      %p130 = scmp.ne.s32.totalorder %s115, %s129
      %p131 = scmp.eq.s32.totalorder %s21, 0
      %p132 = por %p130, %p131
      %s134 = sadd.s32 %s133, 1
      %p137 = scmp.eq.s32.totalorder %s15, 1
      %p138 = scmp.ne.s32.totalorder %s133, %s135
      %p139 = scmp.eq.s32.totalorder %s15, 0
      %p140 = por %p138, %p139
      %p141 = scmp.ne.s32.totalorder %s133, %s135
      %p142 = scmp.eq.s32.totalorder %s20, 1
      %p143 = por %p141, %p142
      %p144 = scmp.ne.s32.totalorder %s135, %s136
      %p145 = scmp.eq.s32.totalorder %s20, 0
      %p146 = por %p144, %p145
      %p147 = scmp.ne.s32.totalorder %s135, %s136
      %p148 = scmp.eq.s32.totalorder %s21, 1
      %p149 = por %p147, %p148
      %p151 = scmp.ne.s32.totalorder %s136, %s150
      %p152 = scmp.eq.s32.totalorder %s21, 0
      %p153 = por %p151, %p152
      %s155 = sadd.s32 %s154, 1
      %p158 = scmp.eq.s32.totalorder %s15, 1
      %p159 = scmp.ne.s32.totalorder %s154, %s156
      %p160 = scmp.eq.s32.totalorder %s15, 0
      %p161 = por %p159, %p160
      %p162 = scmp.ne.s32.totalorder %s154, %s156
      %p163 = scmp.eq.s32.totalorder %s20, 1
      %p164 = por %p162, %p163
      %p165 = scmp.ne.s32.totalorder %s156, %s157
      %p166 = scmp.eq.s32.totalorder %s20, 0
      %p167 = por %p165, %p166
      %p168 = scmp.ne.s32.totalorder %s156, %s157
      %p169 = scmp.eq.s32.totalorder %s21, 1
      %p170 = por %p168, %p169
      %p172 = scmp.ne.s32.totalorder %s157, %s171
      %p173 = scmp.eq.s32.totalorder %s21, 0
      %p174 = por %p172, %p173
      %s175 = ssub.s32 %s22, %s34
      %s176 = ssub.s32 %s23, %s30
      %s177 = sor.u32 %s175, %s176
      %p178 = scmp.eq.s32.totalorder %s177, 0
      %s180 = sadd.s32 %s179, 1
      %s181 = scalar_select %p178, %s179, %s180
      %p184 = pneg %p178
      %p185 = scmp.eq.s32.totalorder %s15, 1
      %p186 = por %p184, %p185
      %p187 = scmp.ne.s32.totalorder %s179, %s182
      %p188 = scmp.eq.s32.totalorder %s15, 0
      %p189 = por %p187, %p188
      %p190 = scmp.ne.s32.totalorder %s179, %s182
      %p191 = scmp.eq.s32.totalorder %s20, 1
      %p192 = por %p190, %p191
      %p193 = scmp.ne.s32.totalorder %s182, %s183
      %p194 = scmp.eq.s32.totalorder %s20, 0
      %p195 = por %p193, %p194
      %p196 = scmp.ne.s32.totalorder %s182, %s183
      %p197 = scmp.eq.s32.totalorder %s21, 1
      %p198 = por %p196, %p197
      %p200 = scmp.ne.s32.totalorder %s183, %s199
      %p201 = scmp.eq.s32.totalorder %s21, 0
      %p202 = por %p200, %p201
      %p203 = scmp.le.s32.totalorder 1, %s15
      %p204 = scmp.lt.s32.totalorder %s15, 3
      %p205 = pnand %p203, %p204
      %p206 = pneg %p205
      // Predicated region
      $region9: #{bottleneck_in_forward.9} parent=5 // pred_check
        _
      $region10: #{bottleneck_in_forward.9} parent=5 // pred_check_branch
        %208 = sbr.rel (%p205) target = $region12
      $region11: #{bottleneck_in_forward.9} parent=5 // pred_region
        %s209 = ssub.s32 %s15, 1
        // Predicated region
        $region13: #{bottleneck_in_forward.9} parent=11 // pred_check
          %p210 = pneg %p104
        $region14: #{bottleneck_in_forward.9} parent=11 // pred_check_branch
          %212 = sbr.rel (%p210) target = $region16
        $region15: #{bottleneck_in_forward.9} parent=11 // pred_region
          _
        $region16: #{bottleneck_in_forward.9} parent=11 // pred_fallthru
          _
        // Predicated region
        $region17: #{bottleneck_in_forward.9} parent=11 // pred_check
          %p213 = pneg %p125
        $region18: #{bottleneck_in_forward.9} parent=11 // pred_check_branch
          %215 = sbr.rel (%p213) target = $region20
        $region19: #{bottleneck_in_forward.9} parent=11 // pred_region
          _
        $region20: #{bottleneck_in_forward.9} parent=11 // pred_fallthru
          _
        // Predicated region
        $region21: #{bottleneck_in_forward.9} parent=11 // pred_check
          %p216 = pneg %p146
        $region22: #{bottleneck_in_forward.9} parent=11 // pred_check_branch
          %218 = sbr.rel (%p216) target = $region24
        $region23: #{bottleneck_in_forward.9} parent=11 // pred_region
          _
        $region24: #{bottleneck_in_forward.9} parent=11 // pred_fallthru
          _
        // Predicated region
        $region25: #{bottleneck_in_forward.9} parent=11 // pred_check
          %p219 = pneg %p167
        $region26: #{bottleneck_in_forward.9} parent=11 // pred_check_branch
          %221 = sbr.rel (%p219) target = $region28
        $region27: #{bottleneck_in_forward.9} parent=11 // pred_region
          _
        $region28: #{bottleneck_in_forward.9} parent=11 // pred_fallthru
          _
      $region12: #{bottleneck_in_forward.9} parent=5 // pred_fallthru
        _
      %p222 = scmp.lt.s32.totalorder %s15, 2
      // Predicated region
      $region29: #{bottleneck_in_forward.9} parent=5 // pred_check
        %p223 = pneg %p222
      $region30: #{bottleneck_in_forward.9} parent=5 // pred_check_branch
        %225 = sbr.rel (%p223) target = $region32
      $region31: #{bottleneck_in_forward.9} parent=5 // pred_region
        // Predicated region
        $region33: #{bottleneck_in_forward.9} parent=31 // pred_check
          %p226 = pneg %p49
        $region34: #{bottleneck_in_forward.9} parent=31 // pred_check_branch
          %228 = sbr.rel (%p226) target = $region36
        $region35: #{bottleneck_in_forward.9} parent=31 // pred_region
          %s229 = smul.u32 2, %s23
          %p230 = scmp.lt.s32.totalorder %s22, 1
          %s231 = scalar_select %p230, %s22, 1
          %p232 = scmp.lt.s32.totalorder %s229, 1
          %s233 = scalar_select %p232, %s229, 1
          %s234 = smul.addr %s231, 2
          %s235 = sadd.s32 %s233, %s234
          %s236 = smul.addr %s235, 4
          %s237 = scalar_lea.vmem %s0, %s236
          %s238 = smul.u32 2, %s23
        $region36: #{bottleneck_in_forward.9} parent=31 // pred_fallthru
          _
        // Predicated region
        $region37: #{bottleneck_in_forward.9} parent=31 // pred_check
          %p239 = pneg %p77
        $region38: #{bottleneck_in_forward.9} parent=31 // pred_check_branch
          %241 = sbr.rel (%p239) target = $region40
        $region39: #{bottleneck_in_forward.9} parent=31 // pred_region
          %s242 = smul.u32 2, %s23
          %p243 = scmp.lt.s32.totalorder %s22, 1
          %s244 = scalar_select %p243, %s22, 1
          %p245 = scmp.lt.s32.totalorder %s242, 1
          %s246 = scalar_select %p245, %s242, 1
          %s247 = smul.addr %s244, 2
          %s248 = sadd.s32 %s246, %s247
          %s249 = smul.addr %s248, 4
          %s250 = scalar_lea.vmem %s1, %s249
          %s251 = smul.u32 2, %s23
        $region40: #{bottleneck_in_forward.9} parent=31 // pred_fallthru
          _
      $region32: #{bottleneck_in_forward.9} parent=5 // pred_fallthru
        _
      %p252 = scmp.le.s32.totalorder 1, %s15
      %p253 = scmp.lt.s32.totalorder %s15, 3
      %p254 = pnand %p252, %p253
      %p255 = pneg %p254
      // Predicated region
      $region41: #{bottleneck_in_forward.9} parent=5 // pred_check
        _
      $region42: #{bottleneck_in_forward.9} parent=5 // pred_check_branch
        %257 = sbr.rel (%p254) target = $region44
      $region43: #{bottleneck_in_forward.9} parent=5 // pred_region
        %s258 = ssub.s32 %s15, 1
        %s259 = smul.u32 2, %s25
        %p260 = scmp.lt.s32.totalorder %s24, 1
        %s261 = scalar_select %p260, %s24, 1
        %p262 = scmp.lt.s32.totalorder %s259, 1
        %s263 = scalar_select %p262, %s259, 1
        %s264 = smul.addr %s261, 2
        %s265 = sadd.s32 %s263, %s264
        %s266 = smul.addr %s265, 4
        %s267 = scalar_lea.vmem %s0, %s266
        %p268 = pneg %p55
        %p269 = pneg %p52
        %s270 = smul.u32 2, %s25
        %p271 = scmp.lt.s32.totalorder %s24, 1
        %s272 = scalar_select %p271, %s24, 1
        %p273 = scmp.lt.s32.totalorder %s270, 1
        %s274 = scalar_select %p273, %s270, 1
        %s275 = smul.addr %s272, 2
        %s276 = sadd.s32 %s274, %s275
        %s277 = smul.addr %s276, 4
        %s278 = scalar_lea.vmem %s1, %s277
        %p279 = pneg %p83
        %p280 = pneg %p80
        %p281 = pneg %p104
        %p282 = pneg %p101
        %p283 = pneg %p125
        %p284 = pneg %p122
        %p285 = pneg %p146
        %p286 = pneg %p143
        %p287 = pneg %p167
        %p288 = pneg %p164
        %p289 = pneg %p195
        %p290 = pneg %p192
        %s291 = sand.u32 %s182, 1
        %s292 = scalar_lea.sflag [#allocation3], %s291
        %s293 = sand.u32 %s182, 1
        %s294 = smul.addr %s293, 16
        %s295 = scalar_lea.vmem [#allocation2], %s294
        %s296 = smul.u32 2, %s25
        %p297 = scmp.lt.s32.totalorder %s24, 1
        %s298 = scalar_select %p297, %s24, 1
        %p299 = scmp.lt.s32.totalorder %s296, 1
        %s300 = scalar_select %p299, %s296, 1
        %s301 = smul.addr %s298, 2
        %s302 = sadd.s32 %s300, %s301
        %s303 = smul.addr %s302, 4
        %s304 = scalar_lea.vmem %s0, %s303
        %s305 = smul.u32 2, %s25
        %s306 = smul.u32 2, %s25
        %p307 = scmp.lt.s32.totalorder %s24, 1
        %s308 = scalar_select %p307, %s24, 1
        %p309 = scmp.lt.s32.totalorder %s306, 1
        %s310 = scalar_select %p309, %s306, 1
        %s311 = smul.addr %s308, 2
        %s312 = sadd.s32 %s310, %s311
        %s313 = smul.addr %s312, 4
        %s314 = scalar_lea.vmem %s1, %s313
        %s315 = smul.u32 2, %s25
        %s316 = smul.u32 2, %s25
        %v317 = vld [vmem:[%s2] sm:$0x1]
        %v318 = vld [vmem:[%s3] sm:$0x1]
        %v319 = vmul.f32 %v317, 0.03125
        %v320 = vmul.f32 %v318, 0.03125
        %v321 = vmul.f32 %v319, %v319
        %v322 = vsub.f32 %v320, %v321
        %v323 = vmax.f32 %v322, 0.0
        %v324 = vadd.f32 %v323, 1e-05
        %v325 = vrsqrt.pop %v324
        %v326 = vld [vmem:[%s314] sm:$0xf]
        %v327 = vld [vmem:[%s314 + $0x4] sm:$0xf]
        %v328 = vunpack.c.l.bf16 %v326
        %v329 = vunpack.c.l.bf16 %v327
        %v331 = vlaneseq
        %v332 = vshrl.u32 %v331, 7
        %v333 = vsub.s32 0, %v332
        %v334 = vrot.slane %v319, %v333
        %v336 = vsub.f32 %v328, %v334
        %v337 = vsub.f32 %v329, %v334
        %v339 = vlaneseq
        %v340 = vshrl.u32 %v339, 7
        %v341 = vsub.s32 0, %v340
        %v342 = vrot.slane %v325, %v341
        %v344 = vmul.f32 %v336, %v342
        %v345 = vmul.f32 %v337, %v342
        %v346 = vld [vmem:[%s4] sm:$0x1]
        %v348 = vlaneseq
        %v349 = vshrl.u32 %v348, 7
        %v350 = vsub.s32 0, %v349
        %v351 = vrot.slane %v346, %v350
        %v353 = vmul.f32 %v344, %v351
        %v354 = vmul.f32 %v345, %v351
        %v355 = vld [vmem:[%s5] sm:$0x1]
        %v357 = vlaneseq
        %v358 = vshrl.u32 %v357, 7
        %v359 = vsub.s32 0, %v358
        %v360 = vrot.slane %v355, %v359
        %v362 = vadd.f32 %v353, %v360
        %v363 = vadd.f32 %v354, %v360
        %v364 = vmax.f32 %v362, 0.0
        %v365 = vmax.f32 %v363, 0.0
        %v366 = vld [vmem:[%s304] sm:$0xf]
        %v367 = vld [vmem:[%s304 + $0x4] sm:$0xf]
        %v368 = vunpack.c.l.bf16 %v366
        %v369 = vunpack.c.l.bf16 %v367
        %v370 = vadd.f32 %v368, %v364
        %v371 = vadd.f32 %v369, %v365
        %v372 = vmax.f32 %v370, 0.0
        %v373 = vmax.f32 %v371, 0.0
        %vm374 = vcmask 130048
        %375 = vst.msk [vmem:[%s295] sm:$0xff] %vm374, %v372
        %376 = vst.msk [vmem:[%s295 + $0x8] sm:$0xff] %vm374, %v373
        %s377 = sand.u32 %s182, 1
        %s378 = scalar_lea.sflag [#allocation3], %s377
        %s379 = sand.u32 %s182, 1
        %s380 = smul.addr %s379, 16
        %s381 = scalar_lea.vmem [#allocation2], %s380
        // Predicated region
        $region45: #{bottleneck_in_forward.9} parent=43 // pred_check
          %p382 = pneg %p192
        $region46: #{bottleneck_in_forward.9} parent=43 // pred_check_branch
          %384 = sbr.rel (%p382) target = $region48
        $region47: #{bottleneck_in_forward.9} parent=43 // pred_region
          %s385 = smul.u32 2, %s25
          %s387 = ssub.s32 256, 256
          %388 = vsyncadd %s378, %s387
          %s389 = smul.addr %s24, 2
          %s390 = sadd.s32 %s385, %s389
          %s391 = smul.addr %s390, 128
          %s392 = scalar_lea.hbm %s6, %s391
          %s393 = sshll.u32 %s381, 4
          %s394 = int_to_ptr.vmem [resolvable:$true] %s393
          %399 = dma.vmem_to_hbm [thread:$0]  %s394, 256, %s392, %s378, 128, 128, 8
        $region48: #{bottleneck_in_forward.9} parent=43 // pred_fallthru
          _
      $region44: #{bottleneck_in_forward.9} parent=5 // pred_fallthru
        _
      %p400 = scmp.le.s32.totalorder 2, %s15
      // Predicated region
      $region49: #{bottleneck_in_forward.9} parent=5 // pred_check
        %p401 = pneg %p400
      $region50: #{bottleneck_in_forward.9} parent=5 // pred_check_branch
        %403 = sbr.rel (%p401) target = $region52
      $region51: #{bottleneck_in_forward.9} parent=5 // pred_region
        %s404 = ssub.s32 %s15, 2
        // Predicated region
        $region53: #{bottleneck_in_forward.9} parent=51 // pred_check
          %p405 = pneg %p198
        $region54: #{bottleneck_in_forward.9} parent=51 // pred_check_branch
          %407 = sbr.rel (%p405) target = $region56
        $region55: #{bottleneck_in_forward.9} parent=51 // pred_region
          %s408 = sand.u32 %s183, 1
          %s409 = scalar_lea.sflag [#allocation3], %s408
          %s410 = sand.u32 %s183, 1
          %s411 = smul.addr %s410, 16
          %s412 = scalar_lea.vmem [#allocation2], %s411
          %413 = dma.done %s409, 256
        $region56: #{bottleneck_in_forward.9} parent=51 // pred_fallthru
          _
      $region52: #{bottleneck_in_forward.9} parent=5 // pred_fallthru
        _
    $region6: #{bottleneck_in_forward.9} parent=1 // loop_footer
      %s19 = sadd.s32 1, %s15
    $region7: #{bottleneck_in_forward.9} parent=1 // loop_footer_branch
      %14 = sbr.rel target = $region3
    $region8: #{bottleneck_in_forward.9} parent=1 // loop_exit
      _
    %414 = vsyncpa [#allocation3], 1
    %s415 = scalar_lea.sflag [#allocation3], 1
    %416 = vsyncpa %s415, 1

</llo_original>
